<compile_context>
chip_gen: v7x
topology: tpu7x:2x2x1
jax: 0.10.0
libtpu: 0.0.40
codegen_flags: <defaults>
</compile_context>

<pallas_src>
import functools
import math

import jax
import jax.numpy as jnp
from jax.experimental import pallas as pl
from jax.experimental.pallas import tpu as pltpu

EPS = 1e-5


def _layer_norm(x, gamma, beta):
    mu = jnp.mean(x, axis=-1, keepdims=True)
    var = jnp.mean((x - mu) ** 2, axis=-1, keepdims=True)
    return (x - mu) * jax.lax.rsqrt(var + EPS) * gamma + beta


def _gelu(x):
    # tanh-approximation GELU (self.ff undefined in __init__; assumption).
    return 0.5 * x * (1.0 + jnp.tanh(0.7978845608028654 * (x + 0.044715 * x * x * x)))


def encoder_block_kernel(x_ref, vec_ref, bf1_ref,
                         wp_ref, wqkv_ref, wo_ref, wf1_ref, wf2_ref,
                         out_ref, o_slab, *, n_heads):
    S = x_ref.shape[1]
    D = wp_ref.shape[1]
    H = n_heads
    dh = D // H
    scale = 1.0 / math.sqrt(dh)

    def mm(a_f32, w_bf16):
        # Weights arrive pre-cast to bf16; cast activations once per matmul.
        # f32 accumulation on the MXU via preferred_element_type.
        return jnp.dot(a_f32.astype(jnp.bfloat16), w_bf16,
                       preferred_element_type=jnp.float32)

    # Packed (8, D) slab: rows = [bp, g1, b1, g2, b2, bf2, pad, pad]  (f32).
    vec = vec_ref[...]
    bp, g1, b1 = vec[0:1], vec[1:2], vec[2:3]
    g2, b2, bf2 = vec[3:4], vec[4:5], vec[5:6]

    x = x_ref[0]                                    # (S, D_in) f32

    # input projection (assumed Linear(D_in -> D, bias))
    xp = mm(x, wp_ref[...]) + bp                    # (S, D) f32
    x_skip = xp

    # norm1 + single fused lane-dense QKV projection
    xn = _layer_norm(xp, g1, b1)
    qkv = mm(xn, wqkv_ref[...])                     # (S, 3D) f32, [Q | K | V]
    qkv_bf = qkv.astype(jnp.bfloat16)               # one cast shared by all heads

    # Self-attention.  dot_general contracts the last dims (no explicit k.T);
    # per-head outputs are stored straight into the VMEM scratch slab.
    # TODO(synk): at production shapes split heads via the grid / flash tiling
    # so each MXU op has >=128 rows instead of (S, dh) lane slices.
    for h in range(H):                              # static unroll, H small
        c = h * dh
        q_h = qkv_bf[:, c:c + dh]
        k_h = qkv_bf[:, D + c:D + c + dh]
        v_h = qkv_bf[:, 2 * D + c:2 * D + c + dh]
        s = jax.lax.dot_general(
            q_h, k_h,
            dimension_numbers=(((1,), (1,)), ((), ())),
            preferred_element_type=jnp.float32) * scale           # (S, S) f32
        s = s - jnp.max(s, axis=-1, keepdims=True)
        p = jnp.exp(s)
        p = p * pl.reciprocal(jnp.sum(p, axis=-1, keepdims=True), approx=True)
        o_slab[:, c:c + dh] = jnp.dot(p.astype(jnp.bfloat16), v_h,
                                      preferred_element_type=jnp.float32)

    # output projection + residual (o_slab replaces the old concat rebuilds)
    x2 = mm(o_slab[...], wo_ref[...]) + x_skip

    # norm2 + feed-forward (assumed Linear -> GELU -> Linear) + residual
    xn2 = _layer_norm(x2, g2, b2)
    h1 = _gelu(mm(xn2, wf1_ref[...]) + bf1_ref[...])
    ff = mm(h1, wf2_ref[...]) + bf2
    xf = x_skip + ff

    # mean over the sequence axis: one fused sublane reduce -> (1, 1, D) store
    out_ref[...] = jnp.mean(xf, axis=0, keepdims=True)[None].astype(out_ref.dtype)


def encoder_block_pallas(x, params, n_heads):
    (wp, bp, g1, b1, wqkv, wo, g2, b2, wf1, bf1, wf2, bf2) = params
    B, S, D_in = x.shape
    D = wp.shape[1]
    FF = wf1.shape[1]

    # Pre-cast MXU weights to bf16 once (done here; stored bf16 in production).
    wp_b, wqkv_b, wo_b, wf1_b, wf2_b = (
        w.astype(jnp.bfloat16) for w in (wp, wqkv, wo, wf1, wf2))

    # Pack the six (D,) bias / LayerNorm vectors into one (8, D) slab (one DMA).
    pad = jnp.zeros((D,), jnp.float32)
    vecs = jnp.stack([bp, g1, b1, g2, b2, bf2, pad, pad], axis=0)
    bf1_2d = bf1.reshape(1, FF)

    def resident(shape):
        # Full-extent block, constant index_map -> fetched once, VMEM-resident.
        return pl.BlockSpec(shape, lambda b: (0,) * len(shape))

    kernel = functools.partial(encoder_block_kernel, n_heads=n_heads)

    out3 = pl.pallas_call(
        kernel,
        grid_spec=pltpu.PrefetchScalarGridSpec(
            num_scalar_prefetch=0,
            grid=(B,),
            in_specs=[
                pl.BlockSpec((1, S, D_in), lambda b: (b, 0, 0)),   # activations
                resident(vecs.shape),
                resident(bf1_2d.shape),
                resident(wp_b.shape),
                resident(wqkv_b.shape),
                resident(wo_b.shape),
                resident(wf1_b.shape),
                resident(wf2_b.shape),
            ],
            out_specs=pl.BlockSpec((1, 1, D), lambda b: (b, 0, 0)),
            scratch_shapes=[pltpu.VMEM((S, D), jnp.float32)],      # head-out slab
        ),
        out_shape=jax.ShapeDtypeStruct((B, 1, D), jnp.float32),
        compiler_params=pltpu.CompilerParams(
            dimension_semantics=("parallel",)),                    # v7x: 2 TCs
    )(x, vecs, bf1_2d, wp_b, wqkv_b, wo_b, wf1_b, wf2_b)
    return out3[:, 0, :]


def encoder_block_ref(x, params, n_heads):
    """Pure-JAX reference mirroring the kernel's bf16-matmul / f32-accumulate numerics."""
    (wp, bp, g1, b1, wqkv, wo, g2, b2, wf1, bf1, wf2, bf2) = params
    B, S, _ = x.shape
    D = wp.shape[1]
    dh = D // n_heads

    def mm(a, w):
        return jnp.dot(a.astype(jnp.bfloat16), w.astype(jnp.bfloat16),
                       preferred_element_type=jnp.float32)

    xp = mm(x, wp) + bp
    x_skip = xp
    xn = _layer_norm(xp, g1, b1)
    qkv = mm(xn, wqkv)                                     # (B, S, 3D)
    q, k, v = jnp.split(qkv, 3, axis=-1)

    def to_heads(t):                                       # (B,S,D) -> (B,H,S,dh)
        return t.reshape(B, S, n_heads, dh).transpose(0, 2, 1, 3)

    qh, kh, vh = to_heads(q), to_heads(k), to_heads(v)
    s = jnp.einsum('bhsd,bhtd->bhst',
                   qh.astype(jnp.bfloat16), kh.astype(jnp.bfloat16),
                   preferred_element_type=jnp.float32) / math.sqrt(dh)
    p = jax.nn.softmax(s, axis=-1)
    o = jnp.einsum('bhst,bhtd->bhsd',
                   p.astype(jnp.bfloat16), vh.astype(jnp.bfloat16),
                   preferred_element_type=jnp.float32)
    o = o.transpose(0, 2, 1, 3).reshape(B, S, D)
    x2 = mm(o, wo) + x_skip
    xn2 = _layer_norm(x2, g2, b2)
    ff = mm(_gelu(mm(xn2, wf1) + bf1), wf2) + bf2
    xf = x_skip + ff
    return jnp.mean(xf, axis=1)


def make_params(key, d_in, d, n_heads, ff_dim):
    ks = jax.random.split(key, 8)
    scale = lambda fan_in: 1.0 / math.sqrt(fan_in)
    wp = jax.random.normal(ks[0], (d_in, d), jnp.float32) * scale(d_in)
    bp = jax.random.normal(ks[1], (d,), jnp.float32) * 0.01
    g1 = jnp.ones((d,), jnp.float32)
    b1 = jnp.zeros((d,), jnp.float32)
    # attn_qkv.weight.T -> (D, 3D): columns [Q | K | V], head-major within each
    wqkv = jax.random.normal(ks[2], (d, 3 * d), jnp.float32) * scale(d)
    # attn_out.weight.T -> (D, D)
    wo = jax.random.normal(ks[3], (d, d), jnp.float32) * scale(d)
    g2 = jnp.ones((d,), jnp.float32)
    b2 = jnp.zeros((d,), jnp.float32)
    wf1 = jax.random.normal(ks[4], (d, ff_dim), jnp.float32) * scale(d)
    bf1 = jax.random.normal(ks[5], (ff_dim,), jnp.float32) * 0.01
    wf2 = jax.random.normal(ks[6], (ff_dim, d), jnp.float32) * scale(ff_dim)
    bf2 = jax.random.normal(ks[7], (d,), jnp.float32) * 0.01
    return (wp, bp, g1, b1, wqkv, wo, g2, b2, wf1, bf1, wf2, bf2)


if __name__ == "__main__":
    B, S, D_IN, D, H = 2, 8, 32, 32, 4
    FF = 4 * D

    key = jax.random.PRNGKey(0)
    kx, kp = jax.random.split(key)
    x = jax.random.normal(kx, (B, S, D_IN), jnp.float32)
    params = make_params(kp, D_IN, D, H, FF)

    out = jax.block_until_ready(encoder_block_pallas(x, params, H))
    ref = jax.block_until_ready(encoder_block_ref(x, params, H))

    assert out.shape == (B, D), out.shape
    # Tolerance covers the EUP approximate reciprocal in softmax plus bf16 MXU
    # accumulation-order differences.
    assert jnp.allclose(out, ref, rtol=1e-2, atol=1e-2), (
        float(jnp.max(jnp.abs(out - ref))))
    print("KERNEL_OK")
</pallas_src>

<mosaic_0001>
module attributes {stable_mosaic.version = 11 : i64} {
  func.func @encoder_block_kernel(%arg0: i32, %arg1: memref<1x8x32xf32, #tpu.memory_space<vmem>>, %arg2: memref<8x32xf32, #tpu.memory_space<vmem>>, %arg3: memref<1x128xf32, #tpu.memory_space<vmem>>, %arg4: memref<32x32xbf16, #tpu.memory_space<vmem>>, %arg5: memref<32x96xbf16, #tpu.memory_space<vmem>>, %arg6: memref<32x32xbf16, #tpu.memory_space<vmem>>, %arg7: memref<32x128xbf16, #tpu.memory_space<vmem>>, %arg8: memref<128x32xbf16, #tpu.memory_space<vmem>>, %arg9: memref<1x1x32xf32, #tpu.memory_space<vmem>>, %arg10: memref<8x32xf32, #tpu.memory_space<vmem>>) attributes {dimension_semantics = [#tpu.dimension_semantics<parallel>], iteration_bounds = array<i64: 2>, scalar_prefetch = 0 : i64, scratch_operands = 1 : i64, tpu.core_type = #tpu.core_type<tc>, window_params = [{transform_indices = @transform_0, window_bounds = array<i64: 1, 8, 32>}, {pipeline_mode = #tpu.pipeline_mode<synchronous>, transform_indices = @transform_1, window_bounds = array<i64: 8, 32>}, {pipeline_mode = #tpu.pipeline_mode<synchronous>, transform_indices = @transform_2, window_bounds = array<i64: 1, 128>}, {pipeline_mode = #tpu.pipeline_mode<synchronous>, transform_indices = @transform_3, window_bounds = array<i64: 32, 32>}, {pipeline_mode = #tpu.pipeline_mode<synchronous>, transform_indices = @transform_4, window_bounds = array<i64: 32, 96>}, {pipeline_mode = #tpu.pipeline_mode<synchronous>, transform_indices = @transform_5, window_bounds = array<i64: 32, 32>}, {pipeline_mode = #tpu.pipeline_mode<synchronous>, transform_indices = @transform_6, window_bounds = array<i64: 32, 128>}, {pipeline_mode = #tpu.pipeline_mode<synchronous>, transform_indices = @transform_7, window_bounds = array<i64: 128, 32>}, {transform_indices = @transform_8, window_bounds = array<i64: 1, 1, 32>}]} {
    %c0 = arith.constant 0 : index
    %c0_0 = arith.constant 0 : index
    %0 = vector.load %arg2[%c0, %c0_0] : memref<8x32xf32, #tpu.memory_space<vmem>>, vector<8x32xf32>
    %1 = vector.extract_strided_slice %0 {offsets = [0, 0], sizes = [1, 32], strides = [1, 1]} : vector<8x32xf32> to vector<1x32xf32>
    %2 = vector.extract_strided_slice %0 {offsets = [1, 0], sizes = [1, 32], strides = [1, 1]} : vector<8x32xf32> to vector<1x32xf32>
    %3 = vector.extract_strided_slice %0 {offsets = [2, 0], sizes = [1, 32], strides = [1, 1]} : vector<8x32xf32> to vector<1x32xf32>
    %4 = vector.extract_strided_slice %0 {offsets = [3, 0], sizes = [1, 32], strides = [1, 1]} : vector<8x32xf32> to vector<1x32xf32>
    %5 = vector.extract_strided_slice %0 {offsets = [4, 0], sizes = [1, 32], strides = [1, 1]} : vector<8x32xf32> to vector<1x32xf32>
    %6 = vector.extract_strided_slice %0 {offsets = [5, 0], sizes = [1, 32], strides = [1, 1]} : vector<8x32xf32> to vector<1x32xf32>
    %c0_1 = arith.constant 0 : index
    %c0_2 = arith.constant 0 : index
    %c0_3 = arith.constant 0 : index
    %7 = vector.load %arg1[%c0_1, %c0_2, %c0_3] : memref<1x8x32xf32, #tpu.memory_space<vmem>>, vector<1x8x32xf32>
    %8 = vector.shape_cast %7 : vector<1x8x32xf32> to vector<8x32xf32>
    %c0_4 = arith.constant 0 : index
    %c0_5 = arith.constant 0 : index
    %9 = vector.load %arg4[%c0_4, %c0_5] : memref<32x32xbf16, #tpu.memory_space<vmem>>, vector<32x32xbf16>
    %10 = arith.truncf %8 : vector<8x32xf32> to vector<8x32xbf16>
    %cst = arith.constant dense<0.000000e+00> : vector<8x32xf32>
    %11 = tpu.matmul %10, %9, %cst {dimension_numbers = #tpu.dot_dimension_numbers<[1], [0], [0], [1], [0, 0, 1, 1], [], []>} : vector<8x32xbf16>, vector<32x32xbf16>, vector<8x32xf32> -> vector<8x32xf32>
    %12 = vector.broadcast %1 : vector<1x32xf32> to vector<8x32xf32>
    %13 = arith.addf %11, %12 : vector<8x32xf32>
    %cst_6 = arith.constant dense<0.000000e+00> : vector<8xf32>
    %14 = vector.multi_reduction <add>, %13, %cst_6 [1] : vector<8x32xf32> to vector<8xf32>
    %15 = vector.shape_cast %14 : vector<8xf32> to vector<8x1xf32>
    %cst_7 = arith.constant 3.200000e+01 : f32
    %16 = vector.broadcast %cst_7 : f32 to vector<8x1xf32>
    %17 = arith.divf %15, %16 : vector<8x1xf32>
    %18 = vector.broadcast %17 : vector<8x1xf32> to vector<8x32xf32>
    %19 = arith.subf %13, %18 : vector<8x32xf32>
    %20 = arith.mulf %19, %19 : vector<8x32xf32>
    %cst_8 = arith.constant dense<0.000000e+00> : vector<8xf32>
    %21 = vector.multi_reduction <add>, %20, %cst_8 [1] : vector<8x32xf32> to vector<8xf32>
    %22 = vector.shape_cast %21 : vector<8xf32> to vector<8x1xf32>
    %cst_9 = arith.constant 3.200000e+01 : f32
    %23 = vector.broadcast %cst_9 : f32 to vector<8x1xf32>
    %24 = arith.divf %22, %23 : vector<8x1xf32>
    %25 = vector.broadcast %17 : vector<8x1xf32> to vector<8x32xf32>
    %26 = arith.subf %13, %25 : vector<8x32xf32>
    %cst_10 = arith.constant 9.99999974E-6 : f32
    %27 = vector.broadcast %cst_10 : f32 to vector<8x1xf32>
    %28 = arith.addf %24, %27 : vector<8x1xf32>
    %29 = math.rsqrt %28 : vector<8x1xf32>
    %30 = vector.broadcast %29 : vector<8x1xf32> to vector<8x32xf32>
    %31 = arith.mulf %26, %30 : vector<8x32xf32>
    %32 = vector.broadcast %2 : vector<1x32xf32> to vector<8x32xf32>
    %33 = arith.mulf %31, %32 : vector<8x32xf32>
    %34 = vector.broadcast %3 : vector<1x32xf32> to vector<8x32xf32>
    %35 = arith.addf %33, %34 : vector<8x32xf32>
    %c0_11 = arith.constant 0 : index
    %c0_12 = arith.constant 0 : index
    %36 = vector.load %arg5[%c0_11, %c0_12] : memref<32x96xbf16, #tpu.memory_space<vmem>>, vector<32x96xbf16>
    %37 = arith.truncf %35 : vector<8x32xf32> to vector<8x32xbf16>
    %cst_13 = arith.constant dense<0.000000e+00> : vector<8x96xf32>
    %38 = tpu.matmul %37, %36, %cst_13 {dimension_numbers = #tpu.dot_dimension_numbers<[1], [0], [0], [1], [0, 0, 1, 1], [], []>} : vector<8x32xbf16>, vector<32x96xbf16>, vector<8x96xf32> -> vector<8x96xf32>
    %39 = arith.truncf %38 : vector<8x96xf32> to vector<8x96xbf16>
    %40 = vector.extract_strided_slice %39 {offsets = [0, 0], sizes = [8, 8], strides = [1, 1]} : vector<8x96xbf16> to vector<8x8xbf16>
    %41 = vector.extract_strided_slice %39 {offsets = [0, 32], sizes = [8, 8], strides = [1, 1]} : vector<8x96xbf16> to vector<8x8xbf16>
    %42 = vector.extract_strided_slice %39 {offsets = [0, 64], sizes = [8, 8], strides = [1, 1]} : vector<8x96xbf16> to vector<8x8xbf16>
    %cst_14 = arith.constant dense<0.000000e+00> : vector<8x8xf32>
    %43 = tpu.matmul %40, %41, %cst_14 {dimension_numbers = #tpu.dot_dimension_numbers<[1], [1], [0], [0], [0, 0, 1, 0], [], []>} : vector<8x8xbf16>, vector<8x8xbf16>, vector<8x8xf32> -> vector<8x8xf32>
    %cst_15 = arith.constant 0.353553385 : f32
    %44 = vector.broadcast %cst_15 : f32 to vector<8x8xf32>
    %45 = arith.mulf %43, %44 : vector<8x8xf32>
    %cst_16 = arith.constant dense<0xFF800000> : vector<8xf32>
    %46 = vector.multi_reduction <maximumf>, %45, %cst_16 [1] : vector<8x8xf32> to vector<8xf32>
    %47 = vector.shape_cast %46 : vector<8xf32> to vector<8x1xf32>
    %48 = vector.broadcast %47 : vector<8x1xf32> to vector<8x8xf32>
    %49 = arith.subf %45, %48 : vector<8x8xf32>
    %50 = math.exp %49 : vector<8x8xf32>
    %cst_17 = arith.constant dense<0.000000e+00> : vector<8xf32>
    %51 = vector.multi_reduction <add>, %50, %cst_17 [1] : vector<8x8xf32> to vector<8xf32>
    %52 = vector.shape_cast %51 : vector<8xf32> to vector<8x1xf32>
    %53 = tpu.reciprocal %52 {approx = true} : vector<8x1xf32> -> vector<8x1xf32>
    %54 = vector.broadcast %53 : vector<8x1xf32> to vector<8x8xf32>
    %55 = arith.mulf %50, %54 : vector<8x8xf32>
    %56 = arith.truncf %55 : vector<8x8xf32> to vector<8x8xbf16>
    %cst_18 = arith.constant dense<0.000000e+00> : vector<8x8xf32>
    %57 = tpu.matmul %56, %42, %cst_18 {dimension_numbers = #tpu.dot_dimension_numbers<[1], [0], [0], [1], [0, 0, 1, 1], [], []>} : vector<8x8xbf16>, vector<8x8xbf16>, vector<8x8xf32> -> vector<8x8xf32>
    %c0_19 = arith.constant 0 : index
    %c0_20 = arith.constant 0 : index
    %58 = vector.load %arg10[%c0_19, %c0_20] : memref<8x32xf32, #tpu.memory_space<vmem>>, vector<8x8xf32>
    tpu.vector_store %arg10[%c0_19, %c0_20], %57 {strides = array<i32>} : memref<8x32xf32, #tpu.memory_space<vmem>>, vector<8x8xf32>,
    %59 = vector.extract_strided_slice %39 {offsets = [0, 8], sizes = [8, 8], strides = [1, 1]} : vector<8x96xbf16> to vector<8x8xbf16>
    %60 = vector.extract_strided_slice %39 {offsets = [0, 40], sizes = [8, 8], strides = [1, 1]} : vector<8x96xbf16> to vector<8x8xbf16>
    %61 = vector.extract_strided_slice %39 {offsets = [0, 72], sizes = [8, 8], strides = [1, 1]} : vector<8x96xbf16> to vector<8x8xbf16>
    %cst_21 = arith.constant dense<0.000000e+00> : vector<8x8xf32>
    %62 = tpu.matmul %59, %60, %cst_21 {dimension_numbers = #tpu.dot_dimension_numbers<[1], [1], [0], [0], [0, 0, 1, 0], [], []>} : vector<8x8xbf16>, vector<8x8xbf16>, vector<8x8xf32> -> vector<8x8xf32>
    %cst_22 = arith.constant 0.353553385 : f32
    %63 = vector.broadcast %cst_22 : f32 to vector<8x8xf32>
    %64 = arith.mulf %62, %63 : vector<8x8xf32>
    %cst_23 = arith.constant dense<0xFF800000> : vector<8xf32>
    %65 = vector.multi_reduction <maximumf>, %64, %cst_23 [1] : vector<8x8xf32> to vector<8xf32>
    %66 = vector.shape_cast %65 : vector<8xf32> to vector<8x1xf32>
    %67 = vector.broadcast %66 : vector<8x1xf32> to vector<8x8xf32>
    %68 = arith.subf %64, %67 : vector<8x8xf32>
    %69 = math.exp %68 : vector<8x8xf32>
    %cst_24 = arith.constant dense<0.000000e+00> : vector<8xf32>
    %70 = vector.multi_reduction <add>, %69, %cst_24 [1] : vector<8x8xf32> to vector<8xf32>
    %71 = vector.shape_cast %70 : vector<8xf32> to vector<8x1xf32>
    %72 = tpu.reciprocal %71 {approx = true} : vector<8x1xf32> -> vector<8x1xf32>
    %73 = vector.broadcast %72 : vector<8x1xf32> to vector<8x8xf32>
    %74 = arith.mulf %69, %73 : vector<8x8xf32>
    %75 = arith.truncf %74 : vector<8x8xf32> to vector<8x8xbf16>
    %cst_25 = arith.constant dense<0.000000e+00> : vector<8x8xf32>
    %76 = tpu.matmul %75, %61, %cst_25 {dimension_numbers = #tpu.dot_dimension_numbers<[1], [0], [0], [1], [0, 0, 1, 1], [], []>} : vector<8x8xbf16>, vector<8x8xbf16>, vector<8x8xf32> -> vector<8x8xf32>
    %c0_26 = arith.constant 0 : index
    %c8 = arith.constant 8 : index
    %77 = vector.load %arg10[%c0_26, %c8] : memref<8x32xf32, #tpu.memory_space<vmem>>, vector<8x8xf32>
    tpu.vector_store %arg10[%c0_26, %c8], %76 {strides = array<i32>} : memref<8x32xf32, #tpu.memory_space<vmem>>, vector<8x8xf32>,
    %78 = vector.extract_strided_slice %39 {offsets = [0, 16], sizes = [8, 8], strides = [1, 1]} : vector<8x96xbf16> to vector<8x8xbf16>
    %79 = vector.extract_strided_slice %39 {offsets = [0, 48], sizes = [8, 8], strides = [1, 1]} : vector<8x96xbf16> to vector<8x8xbf16>
    %80 = vector.extract_strided_slice %39 {offsets = [0, 80], sizes = [8, 8], strides = [1, 1]} : vector<8x96xbf16> to vector<8x8xbf16>
    %cst_27 = arith.constant dense<0.000000e+00> : vector<8x8xf32>
    %81 = tpu.matmul %78, %79, %cst_27 {dimension_numbers = #tpu.dot_dimension_numbers<[1], [1], [0], [0], [0, 0, 1, 0], [], []>} : vector<8x8xbf16>, vector<8x8xbf16>, vector<8x8xf32> -> vector<8x8xf32>
    %cst_28 = arith.constant 0.353553385 : f32
    %82 = vector.broadcast %cst_28 : f32 to vector<8x8xf32>
    %83 = arith.mulf %81, %82 : vector<8x8xf32>
    %cst_29 = arith.constant dense<0xFF800000> : vector<8xf32>
    %84 = vector.multi_reduction <maximumf>, %83, %cst_29 [1] : vector<8x8xf32> to vector<8xf32>
    %85 = vector.shape_cast %84 : vector<8xf32> to vector<8x1xf32>
    %86 = vector.broadcast %85 : vector<8x1xf32> to vector<8x8xf32>
    %87 = arith.subf %83, %86 : vector<8x8xf32>
    %88 = math.exp %87 : vector<8x8xf32>
    %cst_30 = arith.constant dense<0.000000e+00> : vector<8xf32>
    %89 = vector.multi_reduction <add>, %88, %cst_30 [1] : vector<8x8xf32> to vector<8xf32>
    %90 = vector.shape_cast %89 : vector<8xf32> to vector<8x1xf32>
    %91 = tpu.reciprocal %90 {approx = true} : vector<8x1xf32> -> vector<8x1xf32>
    %92 = vector.broadcast %91 : vector<8x1xf32> to vector<8x8xf32>
    %93 = arith.mulf %88, %92 : vector<8x8xf32>
    %94 = arith.truncf %93 : vector<8x8xf32> to vector<8x8xbf16>
    %cst_31 = arith.constant dense<0.000000e+00> : vector<8x8xf32>
    %95 = tpu.matmul %94, %80, %cst_31 {dimension_numbers = #tpu.dot_dimension_numbers<[1], [0], [0], [1], [0, 0, 1, 1], [], []>} : vector<8x8xbf16>, vector<8x8xbf16>, vector<8x8xf32> -> vector<8x8xf32>
    %c0_32 = arith.constant 0 : index
    %c16 = arith.constant 16 : index
    %96 = vector.load %arg10[%c0_32, %c16] : memref<8x32xf32, #tpu.memory_space<vmem>>, vector<8x8xf32>
    tpu.vector_store %arg10[%c0_32, %c16], %95 {strides = array<i32>} : memref<8x32xf32, #tpu.memory_space<vmem>>, vector<8x8xf32>,
    %97 = vector.extract_strided_slice %39 {offsets = [0, 24], sizes = [8, 8], strides = [1, 1]} : vector<8x96xbf16> to vector<8x8xbf16>
    %98 = vector.extract_strided_slice %39 {offsets = [0, 56], sizes = [8, 8], strides = [1, 1]} : vector<8x96xbf16> to vector<8x8xbf16>
    %99 = vector.extract_strided_slice %39 {offsets = [0, 88], sizes = [8, 8], strides = [1, 1]} : vector<8x96xbf16> to vector<8x8xbf16>
    %cst_33 = arith.constant dense<0.000000e+00> : vector<8x8xf32>
    %100 = tpu.matmul %97, %98, %cst_33 {dimension_numbers = #tpu.dot_dimension_numbers<[1], [1], [0], [0], [0, 0, 1, 0], [], []>} : vector<8x8xbf16>, vector<8x8xbf16>, vector<8x8xf32> -> vector<8x8xf32>
    %cst_34 = arith.constant 0.353553385 : f32
    %101 = vector.broadcast %cst_34 : f32 to vector<8x8xf32>
    %102 = arith.mulf %100, %101 : vector<8x8xf32>
    %cst_35 = arith.constant dense<0xFF800000> : vector<8xf32>
    %103 = vector.multi_reduction <maximumf>, %102, %cst_35 [1] : vector<8x8xf32> to vector<8xf32>
    %104 = vector.shape_cast %103 : vector<8xf32> to vector<8x1xf32>
    %105 = vector.broadcast %104 : vector<8x1xf32> to vector<8x8xf32>
    %106 = arith.subf %102, %105 : vector<8x8xf32>
    %107 = math.exp %106 : vector<8x8xf32>
    %cst_36 = arith.constant dense<0.000000e+00> : vector<8xf32>
    %108 = vector.multi_reduction <add>, %107, %cst_36 [1] : vector<8x8xf32> to vector<8xf32>
    %109 = vector.shape_cast %108 : vector<8xf32> to vector<8x1xf32>
    %110 = tpu.reciprocal %109 {approx = true} : vector<8x1xf32> -> vector<8x1xf32>
    %111 = vector.broadcast %110 : vector<8x1xf32> to vector<8x8xf32>
    %112 = arith.mulf %107, %111 : vector<8x8xf32>
    %113 = arith.truncf %112 : vector<8x8xf32> to vector<8x8xbf16>
    %cst_37 = arith.constant dense<0.000000e+00> : vector<8x8xf32>
    %114 = tpu.matmul %113, %99, %cst_37 {dimension_numbers = #tpu.dot_dimension_numbers<[1], [0], [0], [1], [0, 0, 1, 1], [], []>} : vector<8x8xbf16>, vector<8x8xbf16>, vector<8x8xf32> -> vector<8x8xf32>
    %c0_38 = arith.constant 0 : index
    %c24 = arith.constant 24 : index
    %115 = vector.load %arg10[%c0_38, %c24] : memref<8x32xf32, #tpu.memory_space<vmem>>, vector<8x8xf32>
    tpu.vector_store %arg10[%c0_38, %c24], %114 {strides = array<i32>} : memref<8x32xf32, #tpu.memory_space<vmem>>, vector<8x8xf32>,
    %c0_39 = arith.constant 0 : index
    %c0_40 = arith.constant 0 : index
    %116 = vector.load %arg10[%c0_39, %c0_40] : memref<8x32xf32, #tpu.memory_space<vmem>>, vector<8x32xf32>
    %c0_41 = arith.constant 0 : index
    %c0_42 = arith.constant 0 : index
    %117 = vector.load %arg6[%c0_41, %c0_42] : memref<32x32xbf16, #tpu.memory_space<vmem>>, vector<32x32xbf16>
    %118 = arith.truncf %116 : vector<8x32xf32> to vector<8x32xbf16>
    %cst_43 = arith.constant dense<0.000000e+00> : vector<8x32xf32>
    %119 = tpu.matmul %118, %117, %cst_43 {dimension_numbers = #tpu.dot_dimension_numbers<[1], [0], [0], [1], [0, 0, 1, 1], [], []>} : vector<8x32xbf16>, vector<32x32xbf16>, vector<8x32xf32> -> vector<8x32xf32>
    %120 = arith.addf %119, %13 : vector<8x32xf32>
    %cst_44 = arith.constant dense<0.000000e+00> : vector<8xf32>
    %121 = vector.multi_reduction <add>, %120, %cst_44 [1] : vector<8x32xf32> to vector<8xf32>
    %122 = vector.shape_cast %121 : vector<8xf32> to vector<8x1xf32>
    %cst_45 = arith.constant 3.200000e+01 : f32
    %123 = vector.broadcast %cst_45 : f32 to vector<8x1xf32>
    %124 = arith.divf %122, %123 : vector<8x1xf32>
    %125 = vector.broadcast %124 : vector<8x1xf32> to vector<8x32xf32>
    %126 = arith.subf %120, %125 : vector<8x32xf32>
    %127 = arith.mulf %126, %126 : vector<8x32xf32>
    %cst_46 = arith.constant dense<0.000000e+00> : vector<8xf32>
    %128 = vector.multi_reduction <add>, %127, %cst_46 [1] : vector<8x32xf32> to vector<8xf32>
    %129 = vector.shape_cast %128 : vector<8xf32> to vector<8x1xf32>
    %cst_47 = arith.constant 3.200000e+01 : f32
    %130 = vector.broadcast %cst_47 : f32 to vector<8x1xf32>
    %131 = arith.divf %129, %130 : vector<8x1xf32>
    %132 = vector.broadcast %124 : vector<8x1xf32> to vector<8x32xf32>
    %133 = arith.subf %120, %132 : vector<8x32xf32>
    %cst_48 = arith.constant 9.99999974E-6 : f32
    %134 = vector.broadcast %cst_48 : f32 to vector<8x1xf32>
    %135 = arith.addf %131, %134 : vector<8x1xf32>
    %136 = math.rsqrt %135 : vector<8x1xf32>
    %137 = vector.broadcast %136 : vector<8x1xf32> to vector<8x32xf32>
    %138 = arith.mulf %133, %137 : vector<8x32xf32>
    %139 = vector.broadcast %4 : vector<1x32xf32> to vector<8x32xf32>
    %140 = arith.mulf %138, %139 : vector<8x32xf32>
    %141 = vector.broadcast %5 : vector<1x32xf32> to vector<8x32xf32>
    %142 = arith.addf %140, %141 : vector<8x32xf32>
    %c0_49 = arith.constant 0 : index
    %c0_50 = arith.constant 0 : index
    %143 = vector.load %arg7[%c0_49, %c0_50] : memref<32x128xbf16, #tpu.memory_space<vmem>>, vector<32x128xbf16>
    %144 = arith.truncf %142 : vector<8x32xf32> to vector<8x32xbf16>
    %cst_51 = arith.constant dense<0.000000e+00> : vector<8x128xf32>
    %145 = tpu.matmul %144, %143, %cst_51 {dimension_numbers = #tpu.dot_dimension_numbers<[1], [0], [0], [1], [0, 0, 1, 1], [], []>} : vector<8x32xbf16>, vector<32x128xbf16>, vector<8x128xf32> -> vector<8x128xf32>
    %c0_52 = arith.constant 0 : index
    %c0_53 = arith.constant 0 : index
    %146 = vector.load %arg3[%c0_52, %c0_53] : memref<1x128xf32, #tpu.memory_space<vmem>>, vector<1x128xf32>
    %147 = vector.broadcast %146 : vector<1x128xf32> to vector<8x128xf32>
    %148 = arith.addf %145, %147 : vector<8x128xf32>
    %cst_54 = arith.constant 5.000000e-01 : f32
    %149 = vector.broadcast %cst_54 : f32 to vector<8x128xf32>
    %150 = arith.mulf %149, %148 : vector<8x128xf32>
    %cst_55 = arith.constant 4.471500e-02 : f32
    %151 = vector.broadcast %cst_55 : f32 to vector<8x128xf32>
    %152 = arith.mulf %151, %148 : vector<8x128xf32>
    %153 = arith.mulf %152, %148 : vector<8x128xf32>
    %154 = arith.mulf %153, %148 : vector<8x128xf32>
    %155 = arith.addf %148, %154 : vector<8x128xf32>
    %cst_56 = arith.constant 0.797884583 : f32
    %156 = vector.broadcast %cst_56 : f32 to vector<8x128xf32>
    %157 = arith.mulf %156, %155 : vector<8x128xf32>
    %158 = math.tanh %157 : vector<8x128xf32>
    %cst_57 = arith.constant 1.000000e+00 : f32
    %159 = vector.broadcast %cst_57 : f32 to vector<8x128xf32>
    %160 = arith.addf %159, %158 : vector<8x128xf32>
    %161 = arith.mulf %150, %160 : vector<8x128xf32>
    %c0_58 = arith.constant 0 : index
    %c0_59 = arith.constant 0 : index
    %162 = vector.load %arg8[%c0_58, %c0_59] : memref<128x32xbf16, #tpu.memory_space<vmem>>, vector<128x32xbf16>
    %163 = arith.truncf %161 : vector<8x128xf32> to vector<8x128xbf16>
    %cst_60 = arith.constant dense<0.000000e+00> : vector<8x32xf32>
    %164 = tpu.matmul %163, %162, %cst_60 {dimension_numbers = #tpu.dot_dimension_numbers<[1], [0], [0], [1], [0, 0, 1, 1], [], []>} : vector<8x128xbf16>, vector<128x32xbf16>, vector<8x32xf32> -> vector<8x32xf32>
    %165 = vector.broadcast %6 : vector<1x32xf32> to vector<8x32xf32>
    %166 = arith.addf %164, %165 : vector<8x32xf32>
    %167 = arith.addf %13, %166 : vector<8x32xf32>
    %cst_61 = arith.constant dense<0.000000e+00> : vector<32xf32>
    %168 = vector.multi_reduction <add>, %167, %cst_61 [0] : vector<8x32xf32> to vector<32xf32>
    %169 = vector.shape_cast %168 : vector<32xf32> to vector<1x32xf32>
    %cst_62 = arith.constant 8.000000e+00 : f32
    %170 = vector.broadcast %cst_62 : f32 to vector<1x32xf32>
    %171 = arith.divf %169, %170 : vector<1x32xf32>
    %172 = vector.shape_cast %171 : vector<1x32xf32> to vector<1x1x32xf32>
    %c0_63 = arith.constant 0 : index
    %c0_64 = arith.constant 0 : index
    %c0_65 = arith.constant 0 : index
    %173 = vector.load %arg9[%c0_63, %c0_64, %c0_65] : memref<1x1x32xf32, #tpu.memory_space<vmem>>, vector<1x1x32xf32>
    tpu.vector_store %arg9[%c0_63, %c0_64, %c0_65], %172 {strides = array<i32>} : memref<1x1x32xf32, #tpu.memory_space<vmem>>, vector<1x1x32xf32>,
    return
  }
  func.func @transform_0(%arg0: i32) -> (i32, i32, i32) {
    %c0_i32 = arith.constant 0 : i32
    %c0_i32_0 = arith.constant 0 : i32
    %c0_i32_1 = arith.constant 0 : i32
    return %arg0, %c0_i32, %c0_i32_0 : i32, i32, i32
  }
  func.func @transform_1(%arg0: i32) -> (i32, i32) {
    %c0_i32 = arith.constant 0 : i32
    %c0_i32_0 = arith.constant 0 : i32
    %c0_i32_1 = arith.constant 0 : i32
    return %c0_i32, %c0_i32_0 : i32, i32
  }
  func.func @transform_2(%arg0: i32) -> (i32, i32) {
    %c0_i32 = arith.constant 0 : i32
    %c0_i32_0 = arith.constant 0 : i32
    %c0_i32_1 = arith.constant 0 : i32
    return %c0_i32, %c0_i32_0 : i32, i32
  }
  func.func @transform_3(%arg0: i32) -> (i32, i32) {
    %c0_i32 = arith.constant 0 : i32
    %c0_i32_0 = arith.constant 0 : i32
    %c0_i32_1 = arith.constant 0 : i32
    return %c0_i32, %c0_i32_0 : i32, i32
  }
  func.func @transform_4(%arg0: i32) -> (i32, i32) {
    %c0_i32 = arith.constant 0 : i32
    %c0_i32_0 = arith.constant 0 : i32
    %c0_i32_1 = arith.constant 0 : i32
    return %c0_i32, %c0_i32_0 : i32, i32
  }
  func.func @transform_5(%arg0: i32) -> (i32, i32) {
    %c0_i32 = arith.constant 0 : i32
    %c0_i32_0 = arith.constant 0 : i32
    %c0_i32_1 = arith.constant 0 : i32
    return %c0_i32, %c0_i32_0 : i32, i32
  }
  func.func @transform_6(%arg0: i32) -> (i32, i32) {
    %c0_i32 = arith.constant 0 : i32
    %c0_i32_0 = arith.constant 0 : i32
    %c0_i32_1 = arith.constant 0 : i32
    return %c0_i32, %c0_i32_0 : i32, i32
  }
  func.func @transform_7(%arg0: i32) -> (i32, i32) {
    %c0_i32 = arith.constant 0 : i32
    %c0_i32_0 = arith.constant 0 : i32
    %c0_i32_1 = arith.constant 0 : i32
    return %c0_i32, %c0_i32_0 : i32, i32
  }
  func.func @transform_8(%arg0: i32) -> (i32, i32, i32) {
    %c0_i32 = arith.constant 0 : i32
    %c0_i32_0 = arith.constant 0 : i32
    %c0_i32_1 = arith.constant 0 : i32
    return %arg0, %c0_i32, %c0_i32_0 : i32, i32, i32
  }
}

</mosaic_0001>

<llo_original>
// kernel: tpu_custom_call.1
$region0: #{tpu_custom_call.1}
  #allocation0 [shape = 'u32[]', space=smem, size = 0x4, offset = 0x4, fixed_abs, tag = 'smem constant byte address 0x4 - core index']
  #allocation1 [shape = 'u32[144,128]{1,0:T(1,128)}', space=vmem, size = 0x12000, scoped, tag = 'internal scratch']
  #allocation2 [shape = 'f32[8,32]{1,0:T(8,128)}', space=vmem, size = 0x1000, scoped, tag = 'scratch operand']
  %s0 = inlined_call_operand.vmem [shape: f32[2,8,32], index: 0, kind: input, shape index: {}]
  %s1 = inlined_call_operand.hbm [shape: f32[8,32], index: 1, kind: input, shape index: {}]
  %s2 = inlined_call_operand.vmem [shape: f32[1,128], index: 2, kind: input, shape index: {}]
  %s3 = inlined_call_operand.vmem [shape: bf16[32,32], index: 3, kind: input, shape index: {}]
  %s4 = inlined_call_operand.vmem [shape: bf16[32,96], index: 4, kind: input, shape index: {}]
  %s5 = inlined_call_operand.vmem [shape: bf16[32,32], index: 5, kind: input, shape index: {}]
  %s6 = inlined_call_operand.vmem [shape: bf16[32,128], index: 6, kind: input, shape index: {}]
  %s7 = inlined_call_operand.vmem [shape: bf16[128,32], index: 7, kind: input, shape index: {}]
  %s8 = inlined_call_operand.hbm [shape: f32[2,1,32], index: 8, kind: output, shape index: {}]
  %s9 = sld [smem:[#allocation0]]
  $region69: #{tpu_custom_call.1} parent=0
    _
  %s11 = ssub.s32 1, %s9
  %s12 = scalar_select 0, %s11, %s9
  $region1: #{tpu_custom_call.1} parent=0
    #allocation3 [shape = 'u8[4096]{0}', space=vmem, size = 0x1000, scoped, tag = 'input window, operand 1, single buffered']
    #allocation4 [shape = 's32[2]{0}', space=sflag, size = 0x8, scoped, tag = 'scoped memory for tpu_custom_call.1']
    #allocation5 [shape = 's32[2]{0}', space=sflag, size = 0x8, scoped, tag = 'scoped memory for tpu_custom_call.1']
    #allocation6 [shape = 'u8[1024]{0}', space=vmem, size = 0x400, scoped, tag = 'output window, operand 0']
    %13 = vsyncpa [#allocation4], 0
    %14 = vsyncpa [#allocation5], 0
    %s15 = scalar_lea.sflag [#allocation5], 1
    %16 = vsyncpa %s15, 0
    loop: start=0, step=1, limit=4
    $region2: #{tpu_custom_call.1} parent=1 // loop_pre_header
      _
    $region3: #{tpu_custom_call.1} parent=1 // loop_header
      %s18 = sphi 0, %s22
      %p19 = scmp.ge.s32.totalorder %s18, 4
      %s28 = sphi 0, %s30
      %s31 = sphi 0, %s28
      %s32 = sphi 0, %s31
      %s48 = sphi 0, %s32
      %s52 = sphi 0, %s52
      %s54 = sphi 0, %s52
      %s55 = sphi 0, %s54
      %s69 = sphi 0, %s55
      %s73 = sphi 0, %s73
      %s75 = sphi 0, %s73
      %s76 = sphi 0, %s75
      %s90 = sphi 0, %s76
      %s94 = sphi 0, %s94
      %s96 = sphi 0, %s94
      %s97 = sphi 0, %s96
      %s111 = sphi 0, %s97
      %s115 = sphi 0, %s115
      %s117 = sphi 0, %s115
      %s118 = sphi 0, %s117
      %s132 = sphi 0, %s118
      %s136 = sphi 0, %s136
      %s138 = sphi 0, %s136
      %s139 = sphi 0, %s138
      %s153 = sphi 0, %s139
      %s157 = sphi 0, %s157
      %s159 = sphi 0, %s157
      %s160 = sphi 0, %s159
      %s174 = sphi 0, %s160
      %s178 = sphi 0, %s178
      %s180 = sphi 0, %s178
      %s181 = sphi 0, %s180
      %s195 = sphi 0, %s181
      %s201 = sphi 0, %s203
      %s204 = sphi 0, %s201
      %s205 = sphi 0, %s204
      %s221 = sphi 0, %s205
    $region4: #{tpu_custom_call.1} parent=1 // loop_header_branch
      %21 = sbr.rel (%p19) target = $region8
    $region5: #{tpu_custom_call.1} parent=1 // loop_body
      %s23 = ssub.s32 %s18, 1
      %s24 = ssub.s32 %s18, 2
      %s25 = sadd.s32 %s18, 1
      %s26 = ssub.s32 %s18, %s25
      %p27 = scmp.eq.s32.totalorder %s26, 0
      %s29 = sadd.s32 %s28, 1
      %s30 = scalar_select %p27, %s28, %s29
      %p33 = pneg %p27
      %p34 = scmp.eq.s32.totalorder %s18, 1
      %p35 = por %p33, %p34
      %p36 = scmp.ne.s32.totalorder %s28, %s31
      %p37 = scmp.eq.s32.totalorder %s18, 0
      %p38 = por %p36, %p37
      %p39 = scmp.ne.s32.totalorder %s28, %s31
      %p40 = scmp.eq.s32.totalorder %s23, 1
      %p41 = por %p39, %p40
      %p42 = scmp.ne.s32.totalorder %s31, %s32
      %p43 = scmp.eq.s32.totalorder %s23, 0
      %p44 = por %p42, %p43
      %p45 = scmp.ne.s32.totalorder %s31, %s32
      %p46 = scmp.eq.s32.totalorder %s24, 1
      %p47 = por %p45, %p46
      %p49 = scmp.ne.s32.totalorder %s32, %s48
      %p50 = scmp.eq.s32.totalorder %s24, 0
      %p51 = por %p49, %p50
      %s53 = sadd.s32 %s52, 1
      %p56 = scmp.eq.s32.totalorder %s18, 1
      %p57 = scmp.ne.s32.totalorder %s52, %s54
      %p58 = scmp.eq.s32.totalorder %s18, 0
      %p59 = por %p57, %p58
      %p60 = scmp.ne.s32.totalorder %s52, %s54
      %p61 = scmp.eq.s32.totalorder %s23, 1
      %p62 = por %p60, %p61
      %p63 = scmp.ne.s32.totalorder %s54, %s55
      %p64 = scmp.eq.s32.totalorder %s23, 0
      %p65 = por %p63, %p64
      %p66 = scmp.ne.s32.totalorder %s54, %s55
      %p67 = scmp.eq.s32.totalorder %s24, 1
      %p68 = por %p66, %p67
      %p70 = scmp.ne.s32.totalorder %s55, %s69
      %p71 = scmp.eq.s32.totalorder %s24, 0
      %p72 = por %p70, %p71
      %s74 = sadd.s32 %s73, 1
      %p77 = scmp.eq.s32.totalorder %s18, 1
      %p78 = scmp.ne.s32.totalorder %s73, %s75
      %p79 = scmp.eq.s32.totalorder %s18, 0
      %p80 = por %p78, %p79
      %p81 = scmp.ne.s32.totalorder %s73, %s75
      %p82 = scmp.eq.s32.totalorder %s23, 1
      %p83 = por %p81, %p82
      %p84 = scmp.ne.s32.totalorder %s75, %s76
      %p85 = scmp.eq.s32.totalorder %s23, 0
      %p86 = por %p84, %p85
      %p87 = scmp.ne.s32.totalorder %s75, %s76
      %p88 = scmp.eq.s32.totalorder %s24, 1
      %p89 = por %p87, %p88
      %p91 = scmp.ne.s32.totalorder %s76, %s90
      %p92 = scmp.eq.s32.totalorder %s24, 0
      %p93 = por %p91, %p92
      %s95 = sadd.s32 %s94, 1
      %p98 = scmp.eq.s32.totalorder %s18, 1
      %p99 = scmp.ne.s32.totalorder %s94, %s96
      %p100 = scmp.eq.s32.totalorder %s18, 0
      %p101 = por %p99, %p100
      %p102 = scmp.ne.s32.totalorder %s94, %s96
      %p103 = scmp.eq.s32.totalorder %s23, 1
      %p104 = por %p102, %p103
      %p105 = scmp.ne.s32.totalorder %s96, %s97
      %p106 = scmp.eq.s32.totalorder %s23, 0
      %p107 = por %p105, %p106
      %p108 = scmp.ne.s32.totalorder %s96, %s97
      %p109 = scmp.eq.s32.totalorder %s24, 1
      %p110 = por %p108, %p109
      %p112 = scmp.ne.s32.totalorder %s97, %s111
      %p113 = scmp.eq.s32.totalorder %s24, 0
      %p114 = por %p112, %p113
      %s116 = sadd.s32 %s115, 1
      %p119 = scmp.eq.s32.totalorder %s18, 1
      %p120 = scmp.ne.s32.totalorder %s115, %s117
      %p121 = scmp.eq.s32.totalorder %s18, 0
      %p122 = por %p120, %p121
      %p123 = scmp.ne.s32.totalorder %s115, %s117
      %p124 = scmp.eq.s32.totalorder %s23, 1
      %p125 = por %p123, %p124
      %p126 = scmp.ne.s32.totalorder %s117, %s118
      %p127 = scmp.eq.s32.totalorder %s23, 0
      %p128 = por %p126, %p127
      %p129 = scmp.ne.s32.totalorder %s117, %s118
      %p130 = scmp.eq.s32.totalorder %s24, 1
      %p131 = por %p129, %p130
      %p133 = scmp.ne.s32.totalorder %s118, %s132
      %p134 = scmp.eq.s32.totalorder %s24, 0
      %p135 = por %p133, %p134
      %s137 = sadd.s32 %s136, 1
      %p140 = scmp.eq.s32.totalorder %s18, 1
      %p141 = scmp.ne.s32.totalorder %s136, %s138
      %p142 = scmp.eq.s32.totalorder %s18, 0
      %p143 = por %p141, %p142
      %p144 = scmp.ne.s32.totalorder %s136, %s138
      %p145 = scmp.eq.s32.totalorder %s23, 1
      %p146 = por %p144, %p145
      %p147 = scmp.ne.s32.totalorder %s138, %s139
      %p148 = scmp.eq.s32.totalorder %s23, 0
      %p149 = por %p147, %p148
      %p150 = scmp.ne.s32.totalorder %s138, %s139
      %p151 = scmp.eq.s32.totalorder %s24, 1
      %p152 = por %p150, %p151
      %p154 = scmp.ne.s32.totalorder %s139, %s153
      %p155 = scmp.eq.s32.totalorder %s24, 0
      %p156 = por %p154, %p155
      %s158 = sadd.s32 %s157, 1
      %p161 = scmp.eq.s32.totalorder %s18, 1
      %p162 = scmp.ne.s32.totalorder %s157, %s159
      %p163 = scmp.eq.s32.totalorder %s18, 0
      %p164 = por %p162, %p163
      %p165 = scmp.ne.s32.totalorder %s157, %s159
      %p166 = scmp.eq.s32.totalorder %s23, 1
      %p167 = por %p165, %p166
      %p168 = scmp.ne.s32.totalorder %s159, %s160
      %p169 = scmp.eq.s32.totalorder %s23, 0
      %p170 = por %p168, %p169
      %p171 = scmp.ne.s32.totalorder %s159, %s160
      %p172 = scmp.eq.s32.totalorder %s24, 1
      %p173 = por %p171, %p172
      %p175 = scmp.ne.s32.totalorder %s160, %s174
      %p176 = scmp.eq.s32.totalorder %s24, 0
      %p177 = por %p175, %p176
      %s179 = sadd.s32 %s178, 1
      %p182 = scmp.eq.s32.totalorder %s18, 1
      %p183 = scmp.ne.s32.totalorder %s178, %s180
      %p184 = scmp.eq.s32.totalorder %s18, 0
      %p185 = por %p183, %p184
      %p186 = scmp.ne.s32.totalorder %s178, %s180
      %p187 = scmp.eq.s32.totalorder %s23, 1
      %p188 = por %p186, %p187
      %p189 = scmp.ne.s32.totalorder %s180, %s181
      %p190 = scmp.eq.s32.totalorder %s23, 0
      %p191 = por %p189, %p190
      %p192 = scmp.ne.s32.totalorder %s180, %s181
      %p193 = scmp.eq.s32.totalorder %s24, 1
      %p194 = por %p192, %p193
      %p196 = scmp.ne.s32.totalorder %s181, %s195
      %p197 = scmp.eq.s32.totalorder %s24, 0
      %p198 = por %p196, %p197
      %s199 = ssub.s32 %s18, %s25
      %p200 = scmp.eq.s32.totalorder %s199, 0
      %s202 = sadd.s32 %s201, 1
      %s203 = scalar_select %p200, %s201, %s202
      %p206 = pneg %p200
      %p207 = scmp.eq.s32.totalorder %s18, 1
      %p208 = por %p206, %p207
      %p209 = scmp.ne.s32.totalorder %s201, %s204
      %p210 = scmp.eq.s32.totalorder %s18, 0
      %p211 = por %p209, %p210
      %p212 = scmp.ne.s32.totalorder %s201, %s204
      %p213 = scmp.eq.s32.totalorder %s23, 1
      %p214 = por %p212, %p213
      %p215 = scmp.ne.s32.totalorder %s204, %s205
      %p216 = scmp.eq.s32.totalorder %s23, 0
      %p217 = por %p215, %p216
      %p218 = scmp.ne.s32.totalorder %s204, %s205
      %p219 = scmp.eq.s32.totalorder %s24, 1
      %p220 = por %p218, %p219
      %p222 = scmp.ne.s32.totalorder %s205, %s221
      %p223 = scmp.eq.s32.totalorder %s24, 0
      %p224 = por %p222, %p223
      %p225 = scmp.le.s32.totalorder 1, %s18
      %p226 = scmp.lt.s32.totalorder %s18, 3
      %p227 = pnand %p225, %p226
      %p228 = pneg %p227
      // Predicated region
      $region9: #{tpu_custom_call.1} parent=5 // pred_check
        _
      $region10: #{tpu_custom_call.1} parent=5 // pred_check_branch
        %230 = sbr.rel (%p227) target = $region12
      $region11: #{tpu_custom_call.1} parent=5 // pred_region
        %s231 = ssub.s32 %s18, 1
        // Predicated region
        $region13: #{tpu_custom_call.1} parent=11 // pred_check
          %p232 = pneg %p65
        $region14: #{tpu_custom_call.1} parent=11 // pred_check_branch
          %234 = sbr.rel (%p232) target = $region16
        $region15: #{tpu_custom_call.1} parent=11 // pred_region
          %s236 = ssub.s32 128, 128
          %237 = vsyncadd [#allocation4], %s236
          %s239 = sshll.u32 [#allocation3], 4
          %s240 = int_to_ptr.vmem [resolvable:$true] %s239
          %242 = dma.hbm_to_vmem [thread:$0]  %s1, 128, %s240, [#allocation4]
        $region16: #{tpu_custom_call.1} parent=11 // pred_fallthru
          _
        // Predicated region
        $region17: #{tpu_custom_call.1} parent=11 // pred_check
          %p243 = pneg %p86
        $region18: #{tpu_custom_call.1} parent=11 // pred_check_branch
          %245 = sbr.rel (%p243) target = $region20
        $region19: #{tpu_custom_call.1} parent=11 // pred_region
          _
        $region20: #{tpu_custom_call.1} parent=11 // pred_fallthru
          _
        // Predicated region
        $region21: #{tpu_custom_call.1} parent=11 // pred_check
          %p246 = pneg %p107
        $region22: #{tpu_custom_call.1} parent=11 // pred_check_branch
          %248 = sbr.rel (%p246) target = $region24
        $region23: #{tpu_custom_call.1} parent=11 // pred_region
          _
        $region24: #{tpu_custom_call.1} parent=11 // pred_fallthru
          _
        // Predicated region
        $region25: #{tpu_custom_call.1} parent=11 // pred_check
          %p249 = pneg %p128
        $region26: #{tpu_custom_call.1} parent=11 // pred_check_branch
          %251 = sbr.rel (%p249) target = $region28
        $region27: #{tpu_custom_call.1} parent=11 // pred_region
          _
        $region28: #{tpu_custom_call.1} parent=11 // pred_fallthru
          _
        // Predicated region
        $region29: #{tpu_custom_call.1} parent=11 // pred_check
          %p252 = pneg %p149
        $region30: #{tpu_custom_call.1} parent=11 // pred_check_branch
          %254 = sbr.rel (%p252) target = $region32
        $region31: #{tpu_custom_call.1} parent=11 // pred_region
          _
        $region32: #{tpu_custom_call.1} parent=11 // pred_fallthru
          _
        // Predicated region
        $region33: #{tpu_custom_call.1} parent=11 // pred_check
          %p255 = pneg %p170
        $region34: #{tpu_custom_call.1} parent=11 // pred_check_branch
          %257 = sbr.rel (%p255) target = $region36
        $region35: #{tpu_custom_call.1} parent=11 // pred_region
          _
        $region36: #{tpu_custom_call.1} parent=11 // pred_fallthru
          _
        // Predicated region
        $region37: #{tpu_custom_call.1} parent=11 // pred_check
          %p258 = pneg %p191
        $region38: #{tpu_custom_call.1} parent=11 // pred_check_branch
          %260 = sbr.rel (%p258) target = $region40
        $region39: #{tpu_custom_call.1} parent=11 // pred_region
          _
        $region40: #{tpu_custom_call.1} parent=11 // pred_fallthru
          _
      $region12: #{tpu_custom_call.1} parent=5 // pred_fallthru
        _
      %p261 = scmp.lt.s32.totalorder %s18, 2
      // Predicated region
      $region41: #{tpu_custom_call.1} parent=5 // pred_check
        %p262 = pneg %p261
      $region42: #{tpu_custom_call.1} parent=5 // pred_check_branch
        %264 = sbr.rel (%p262) target = $region44
      $region43: #{tpu_custom_call.1} parent=5 // pred_region
        // Predicated region
        $region45: #{tpu_custom_call.1} parent=43 // pred_check
          %p265 = pneg %p38
        $region46: #{tpu_custom_call.1} parent=43 // pred_check_branch
          %267 = sbr.rel (%p265) target = $region48
        $region47: #{tpu_custom_call.1} parent=43 // pred_region
          %p268 = scmp.lt.s32.totalorder %s18, 1
          %s269 = scalar_select %p268, %s18, 1
          %s270 = smul.addr %s269, 8
          %s271 = scalar_lea.vmem %s0, %s270
        $region48: #{tpu_custom_call.1} parent=43 // pred_fallthru
          _
      $region44: #{tpu_custom_call.1} parent=5 // pred_fallthru
        _
      %p272 = scmp.le.s32.totalorder 1, %s18
      %p273 = scmp.lt.s32.totalorder %s18, 3
      %p274 = pnand %p272, %p273
      %p275 = pneg %p274
      // Predicated region
      $region49: #{tpu_custom_call.1} parent=5 // pred_check
        _
      $region50: #{tpu_custom_call.1} parent=5 // pred_check_branch
        %277 = sbr.rel (%p274) target = $region52
      $region51: #{tpu_custom_call.1} parent=5 // pred_region
        %s278 = ssub.s32 %s18, 1
        // Predicated region
        $region53: #{tpu_custom_call.1} parent=51 // pred_check
          %p279 = pneg %p65
        $region54: #{tpu_custom_call.1} parent=51 // pred_check_branch
          %281 = sbr.rel (%p279) target = $region56
        $region55: #{tpu_custom_call.1} parent=51 // pred_region
          %282 = dma.done [#allocation4], 128
        $region56: #{tpu_custom_call.1} parent=51 // pred_fallthru
          _
        %p283 = scmp.lt.s32.totalorder %s23, 1
        %s284 = scalar_select %p283, %s23, 1
        %s285 = smul.addr %s284, 8
        %s286 = scalar_lea.vmem %s0, %s285
        %p287 = pneg %p44
        %p288 = pneg %p41
        %p289 = pneg %p65
        %p290 = pneg %p62
        %p291 = pneg %p86
        %p292 = pneg %p83
        %p293 = pneg %p107
        %p294 = pneg %p104
        %p295 = pneg %p128
        %p296 = pneg %p125
        %p297 = pneg %p149
        %p298 = pneg %p146
        %p299 = pneg %p170
        %p300 = pneg %p167
        %p301 = pneg %p191
        %p302 = pneg %p188
        %p303 = pneg %p217
        %p304 = pneg %p214
        %s305 = sand.u32 %s204, 1
        %s306 = scalar_lea.sflag [#allocation5], %s305
        %s307 = sand.u32 %s204, 1
        %s308 = scalar_lea.vmem [#allocation6], %s307
        %p309 = scmp.lt.s32.totalorder %s23, 1
        %s310 = scalar_select %p309, %s23, 1
        %s311 = smul.addr %s310, 8
        %s312 = scalar_lea.vmem %s0, %s311
        %v314 = vld [vmem:[#allocation3] sm:$0xff]
        %v315 = vld [vmem:[%s312] sm:$0xff]
        %v316 = vld [vmem:[%s3] sm:$0xf]
        %v317 = vld [vmem:[%s3 + $0x4] sm:$0xf]
        %v318 = vld [vmem:[%s3 + $0x8] sm:$0xf]
        %v319 = vld [vmem:[%s3 + $0xc] sm:$0xf]
        %v320 = vpack.c.bf16 %v315, %v315
        %v321 = vlaneseq
        %v322 = vshrl.u32 %v321, 7
        %v323 = vsub.s32 0, %v322
        %v324 = vrot.slane %v314, %v323
        %v329 = vunpack.c.l.b16 %v316
        %v330 = vunpack.c.l.b16 %v317
        %v331 = vunpack.c.l.b16 %v318
        %v332 = vunpack.c.l.b16 %v319
        %v333 = vpack.c.b16 %v330, %v329
        %v334 = vpack.c.b16 %v332, %v331
        %vm337 = vcmask 261120
        %v339 = vsel %vm337, %v320, 0
        %341 = vmatprep.subr.bf16.mxu0 0
        %342 = vmatpush1.bf16.msra.mxu0 %v333
        %343 = vmatprep.subr.bf16.mxu0 0
        %344 = vmatpush1.bf16.msra.mxu0 %v334
        %345 = vmatprep.subr.bf16.mxu0 0
        %346 = vmatpush1.bf16.msra.mxu0 0
        %347 = vmatprep.subr.bf16.mxu0 0
        %348 = vmatpush1.bf16.msra.mxu0 0
        %349 = vmatprep.subr.bf16.mxu0 0
        %350 = vmatpush1.bf16.msra.mxu0 0
        %351 = vmatprep.subr.bf16.mxu0 0
        %352 = vmatpush1.bf16.msra.mxu0 0
        %353 = vmatprep.subr.bf16.mxu0 0
        %354 = vmatpush1.bf16.msra.mxu0 0
        %355 = vmatprep.subr.bf16.mxu0 0
        %356 = vmatpush1.bf16.msra.mxu0 0
        %357 = vmatprep.subr.bf16.mxu0 0
        %358 = vmatpush1.bf16.msra.mxu0 0
        %359 = vmatprep.subr.bf16.mxu0 0
        %360 = vmatpush1.bf16.msra.mxu0 0
        %361 = vmatprep.subr.bf16.mxu0 0
        %362 = vmatpush1.bf16.msra.mxu0 0
        %363 = vmatprep.subr.bf16.mxu0 0
        %364 = vmatpush1.bf16.msra.mxu0 0
        %365 = vmatprep.subr.bf16.mxu0 0
        %366 = vmatpush1.bf16.msra.mxu0 0
        %367 = vmatprep.subr.bf16.mxu0 0
        %368 = vmatpush1.bf16.msra.mxu0 0
        %369 = vmatprep.subr.bf16.mxu0 0
        %370 = vmatpush1.bf16.msra.mxu0 0
        %371 = vmatprep.subr.bf16.mxu0 0
        %372 = vmatpush1.bf16.msra.mxu0 0
        %373 = vmatprep.mubr.bf16.mxu0 0
        %374 = vmatmul.mubr.bf16.gmra.mrb[0].mxu0 %v339
        %v375 = vpop.f32.mrb[0].mxu0
        %v376 = vadd.f32 %v324, %v375
        %v377 = vpop.f32.mrb[0].mxu0
        %v378 = vpop.f32.mrb[0].mxu0
        %v379 = vpop.f32.mrb[0].mxu0
        %380 = vdwg.mxu0
        %v381 = vsel %vm337, %v376, 0.0
        %382 = vadd.xlane.f32.xlu0 %v381
        %v383 = vpop.xlane.xlu0 %382
        %v384 = vrcp.pop 32.0
        %v385 = vmul.f32 %v383, %v384
        %v386 = vsub.f32 %v376, %v385
        %v387 = vmul.f32 %v386, %v386
        %v388 = vsel %vm337, %v387, 0.0
        %389 = vadd.xlane.f32.xlu0 %v388
        %v390 = vpop.xlane.xlu0 %389
        %v391 = vmul.f32 %v390, %v384
        %v392 = vadd.f32 %v391, 1e-05
        %v393 = vrsqrt.pop %v392
        %v394 = vmul.f32 %v386, %v393
        %v395 = vlaneseq
        %v396 = vshrl.u32 %v395, 7
        %v397 = vsub.s32 1, %v396
        %v398 = vrot.slane %v314, %v397
        %v399 = vmul.f32 %v394, %v398
        %v400 = vlaneseq
        %v401 = vshrl.u32 %v400, 7
        %v402 = vsub.s32 2, %v401
        %v403 = vrot.slane %v314, %v402
        %v404 = vadd.f32 %v399, %v403
        %v405 = vld [vmem:[%s4] sm:$0xf]
        %v406 = vld [vmem:[%s4 + $0x4] sm:$0xf]
        %v407 = vld [vmem:[%s4 + $0x8] sm:$0xf]
        %v408 = vld [vmem:[%s4 + $0xc] sm:$0xf]
        %v409 = vpack.c.bf16 %v404, %v404
        %v414 = vunpack.c.l.b16 %v405
        %v415 = vunpack.c.l.b16 %v406
        %v416 = vunpack.c.l.b16 %v407
        %v417 = vunpack.c.l.b16 %v408
        %v418 = vpack.c.b16 %v415, %v414
        %v419 = vpack.c.b16 %v417, %v416
        %v423 = vsel %vm337, %v409, 0
        %425 = vmatprep.subr.bf16.mxu0 0
        %426 = vmatpush1.bf16.msra.mxu0 %v418
        %427 = vmatprep.subr.bf16.mxu0 0
        %428 = vmatpush1.bf16.msra.mxu0 %v419
        %429 = vmatprep.subr.bf16.mxu0 0
        %430 = vmatpush1.bf16.msra.mxu0 0
        %431 = vmatprep.subr.bf16.mxu0 0
        %432 = vmatpush1.bf16.msra.mxu0 0
        %433 = vmatprep.subr.bf16.mxu0 0
        %434 = vmatpush1.bf16.msra.mxu0 0
        %435 = vmatprep.subr.bf16.mxu0 0
        %436 = vmatpush1.bf16.msra.mxu0 0
        %437 = vmatprep.subr.bf16.mxu0 0
        %438 = vmatpush1.bf16.msra.mxu0 0
        %439 = vmatprep.subr.bf16.mxu0 0
        %440 = vmatpush1.bf16.msra.mxu0 0
        %441 = vmatprep.subr.bf16.mxu0 0
        %442 = vmatpush1.bf16.msra.mxu0 0
        %443 = vmatprep.subr.bf16.mxu0 0
        %444 = vmatpush1.bf16.msra.mxu0 0
        %445 = vmatprep.subr.bf16.mxu0 0
        %446 = vmatpush1.bf16.msra.mxu0 0
        %447 = vmatprep.subr.bf16.mxu0 0
        %448 = vmatpush1.bf16.msra.mxu0 0
        %449 = vmatprep.subr.bf16.mxu0 0
        %450 = vmatpush1.bf16.msra.mxu0 0
        %451 = vmatprep.subr.bf16.mxu0 0
        %452 = vmatpush1.bf16.msra.mxu0 0
        %453 = vmatprep.subr.bf16.mxu0 0
        %454 = vmatpush1.bf16.msra.mxu0 0
        %455 = vmatprep.subr.bf16.mxu0 0
        %456 = vmatpush1.bf16.msra.mxu0 0
        %457 = vmatprep.mubr.bf16.mxu0 0
        %458 = vmatmul.mubr.bf16.gmra.mrb[0].mxu0 %v423
        %v459 = vpop.f32.mrb[0].mxu0
        %v460 = vadd.f32 0.0, %v459
        %v461 = vpop.f32.mrb[0].mxu0
        %v462 = vpop.f32.mrb[0].mxu0
        %v463 = vpop.f32.mrb[0].mxu0
        %464 = vdwg.mxu0
        %v465 = vpack.c.bf16 %v460, %v460
        %467 = vrot.lane.b32.xlu0 %v465, 96
        %v468 = vpop.permute.xlu0 %467
        %vm469 = vcmask 64512
        %v471 = vsel %vm469, %v465, 0
        %v474 = vsel %vm469, %v468, 0
        %476 = vmatprep.subr.bf16.mxu0 0
        %477 = vmatpush1.bf16.xpose.msra.mxu0 %v474
        %478 = vmatprep.subr.bf16.mxu0 0
        %479 = vmatpush1.bf16.xpose.msra.mxu0 0
        %480 = vmatprep.subr.bf16.mxu0 0
        %481 = vmatpush1.bf16.xpose.msra.mxu0 0
        %482 = vmatprep.subr.bf16.mxu0 0
        %483 = vmatpush1.bf16.xpose.msra.mxu0 0
        %484 = vmatprep.subr.bf16.mxu0 0
        %485 = vmatpush1.bf16.xpose.msra.mxu0 0
        %486 = vmatprep.subr.bf16.mxu0 0
        %487 = vmatpush1.bf16.xpose.msra.mxu0 0
        %488 = vmatprep.subr.bf16.mxu0 0
        %489 = vmatpush1.bf16.xpose.msra.mxu0 0
        %490 = vmatprep.subr.bf16.mxu0 0
        %491 = vmatpush1.bf16.xpose.msra.mxu0 0
        %492 = vmatprep.subr.bf16.mxu0 0
        %493 = vmatpush1.bf16.xpose.msra.mxu0 0
        %494 = vmatprep.subr.bf16.mxu0 0
        %495 = vmatpush1.bf16.xpose.msra.mxu0 0
        %496 = vmatprep.subr.bf16.mxu0 0
        %497 = vmatpush1.bf16.xpose.msra.mxu0 0
        %498 = vmatprep.subr.bf16.mxu0 0
        %499 = vmatpush1.bf16.xpose.msra.mxu0 0
        %500 = vmatprep.subr.bf16.mxu0 0
        %501 = vmatpush1.bf16.xpose.msra.mxu0 0
        %502 = vmatprep.subr.bf16.mxu0 0
        %503 = vmatpush1.bf16.xpose.msra.mxu0 0
        %504 = vmatprep.subr.bf16.mxu0 0
        %505 = vmatpush1.bf16.xpose.msra.mxu0 0
        %506 = vmatprep.subr.bf16.mxu0 0
        %507 = vmatpush1.bf16.xpose.msra.mxu0 0
        %508 = vmatprep.mubr.bf16.mxu0 0
        %509 = vmatmul.mubr.bf16.gmra.mrb[0].mxu0 %v471
        %v510 = vpop.f32.mrb[0].mxu0
        %v511 = vadd.f32 0.0, %v510
        %v512 = vpop.f32.mrb[0].mxu0
        %v513 = vpop.f32.mrb[0].mxu0
        %v514 = vpop.f32.mrb[0].mxu0
        %515 = vdwg.mxu0
        %v516 = vmul.f32 %v511, 0.35355338
        %v517 = vsel %vm469, %v516, -inf
        %518 = vmax.xlane.f32.xlu0 %v517
        %v519 = vpop.xlane.xlu0 %518
        %v520 = vsub.f32 %v516, %v519
        %v521 = vmul.f32 %v520, 1.442695
        %v522 = vpow.pop %v521
        %v523 = vsel %vm469, %v522, 0.0
        %524 = vadd.xlane.f32.xlu0 %v523
        %v525 = vpop.xlane.xlu0 %524
        %v526 = vrcp.pop %v525
        %v527 = vmul.f32 %v522, %v526
        %v528 = vpack.c.bf16 %v527, %v527
        %529 = vrot.lane.b32.xlu0 %v465, 64
        %v530 = vpop.permute.xlu0 %529
        %v532 = vsel %vm469, %v528, 0
        %vm534 = vcmask 1043456
        %v536 = vsel %vm534, %v530, 0
        %538 = vmatprep.subr.bf16.mxu0 0
        %539 = vmatpush1.bf16.msra.mxu0 %v536
        %540 = vmatprep.subr.bf16.mxu0 0
        %541 = vmatpush1.bf16.msra.mxu0 0
        %542 = vmatprep.subr.bf16.mxu0 0
        %543 = vmatpush1.bf16.msra.mxu0 0
        %544 = vmatprep.subr.bf16.mxu0 0
        %545 = vmatpush1.bf16.msra.mxu0 0
        %546 = vmatprep.subr.bf16.mxu0 0
        %547 = vmatpush1.bf16.msra.mxu0 0
        %548 = vmatprep.subr.bf16.mxu0 0
        %549 = vmatpush1.bf16.msra.mxu0 0
        %550 = vmatprep.subr.bf16.mxu0 0
        %551 = vmatpush1.bf16.msra.mxu0 0
        %552 = vmatprep.subr.bf16.mxu0 0
        %553 = vmatpush1.bf16.msra.mxu0 0
        %554 = vmatprep.subr.bf16.mxu0 0
        %555 = vmatpush1.bf16.msra.mxu0 0
        %556 = vmatprep.subr.bf16.mxu0 0
        %557 = vmatpush1.bf16.msra.mxu0 0
        %558 = vmatprep.subr.bf16.mxu0 0
        %559 = vmatpush1.bf16.msra.mxu0 0
        %560 = vmatprep.subr.bf16.mxu0 0
        %561 = vmatpush1.bf16.msra.mxu0 0
        %562 = vmatprep.subr.bf16.mxu0 0
        %563 = vmatpush1.bf16.msra.mxu0 0
        %564 = vmatprep.subr.bf16.mxu0 0
        %565 = vmatpush1.bf16.msra.mxu0 0
        %566 = vmatprep.subr.bf16.mxu0 0
        %567 = vmatpush1.bf16.msra.mxu0 0
        %568 = vmatprep.subr.bf16.mxu0 0
        %569 = vmatpush1.bf16.msra.mxu0 0
        %570 = vmatprep.mubr.bf16.mxu0 0
        %571 = vmatmul.mubr.bf16.gmra.mrb[0].mxu0 %v532
        %v572 = vpop.f32.mrb[0].mxu0
        %v573 = vadd.f32 0.0, %v572
        %v574 = vpop.f32.mrb[0].mxu0
        %v575 = vpop.f32.mrb[0].mxu0
        %v576 = vpop.f32.mrb[0].mxu0
        %577 = vdwg.mxu0
        %578 = vst.msk [vmem:[#allocation2] sm:$0xff] %vm469, %v573
        %579 = vrot.lane.b32.xlu0 %v465, 120
        %v580 = vpop.permute.xlu0 %579
        %581 = vrot.lane.b32.xlu0 %v465, 88
        %v582 = vpop.permute.xlu0 %581
        %v584 = vsel %vm469, %v580, 0
        %v587 = vsel %vm469, %v582, 0
        %589 = vmatprep.subr.bf16.mxu0 0
        %590 = vmatpush1.bf16.xpose.msra.mxu0 %v587
        %591 = vmatprep.subr.bf16.mxu0 0
        %592 = vmatpush1.bf16.xpose.msra.mxu0 0
        %593 = vmatprep.subr.bf16.mxu0 0
        %594 = vmatpush1.bf16.xpose.msra.mxu0 0
        %595 = vmatprep.subr.bf16.mxu0 0
        %596 = vmatpush1.bf16.xpose.msra.mxu0 0
        %597 = vmatprep.subr.bf16.mxu0 0
        %598 = vmatpush1.bf16.xpose.msra.mxu0 0
        %599 = vmatprep.subr.bf16.mxu0 0
        %600 = vmatpush1.bf16.xpose.msra.mxu0 0
        %601 = vmatprep.subr.bf16.mxu0 0
        %602 = vmatpush1.bf16.xpose.msra.mxu0 0
        %603 = vmatprep.subr.bf16.mxu0 0
        %604 = vmatpush1.bf16.xpose.msra.mxu0 0
        %605 = vmatprep.subr.bf16.mxu0 0
        %606 = vmatpush1.bf16.xpose.msra.mxu0 0
        %607 = vmatprep.subr.bf16.mxu0 0
        %608 = vmatpush1.bf16.xpose.msra.mxu0 0
        %609 = vmatprep.subr.bf16.mxu0 0
        %610 = vmatpush1.bf16.xpose.msra.mxu0 0
        %611 = vmatprep.subr.bf16.mxu0 0
        %612 = vmatpush1.bf16.xpose.msra.mxu0 0
        %613 = vmatprep.subr.bf16.mxu0 0
        %614 = vmatpush1.bf16.xpose.msra.mxu0 0
        %615 = vmatprep.subr.bf16.mxu0 0
        %616 = vmatpush1.bf16.xpose.msra.mxu0 0
        %617 = vmatprep.subr.bf16.mxu0 0
        %618 = vmatpush1.bf16.xpose.msra.mxu0 0
        %619 = vmatprep.subr.bf16.mxu0 0
        %620 = vmatpush1.bf16.xpose.msra.mxu0 0
        %621 = vmatprep.mubr.bf16.mxu0 0
        %622 = vmatmul.mubr.bf16.gmra.mrb[0].mxu0 %v584
        %v623 = vpop.f32.mrb[0].mxu0
        %v624 = vadd.f32 0.0, %v623
        %v625 = vpop.f32.mrb[0].mxu0
        %v626 = vpop.f32.mrb[0].mxu0
        %v627 = vpop.f32.mrb[0].mxu0
        %628 = vdwg.mxu0
        %v629 = vmul.f32 %v624, 0.35355338
        %v630 = vsel %vm469, %v629, -inf
        %631 = vmax.xlane.f32.xlu0 %v630
        %v632 = vpop.xlane.xlu0 %631
        %v633 = vsub.f32 %v629, %v632
        %v634 = vmul.f32 %v633, 1.442695
        %v635 = vpow.pop %v634
        %v636 = vsel %vm469, %v635, 0.0
        %637 = vadd.xlane.f32.xlu0 %v636
        %v638 = vpop.xlane.xlu0 %637
        %v639 = vrcp.pop %v638
        %v640 = vmul.f32 %v635, %v639
        %v641 = vpack.c.bf16 %v640, %v640
        %642 = vrot.lane.b32.xlu0 %v465, 56
        %v643 = vpop.permute.xlu0 %642
        %v645 = vsel %vm469, %v641, 0
        %v648 = vsel %vm534, %v643, 0
        %650 = vmatprep.subr.bf16.mxu0 0
        %651 = vmatpush1.bf16.msra.mxu0 %v648
        %652 = vmatprep.subr.bf16.mxu0 0
        %653 = vmatpush1.bf16.msra.mxu0 0
        %654 = vmatprep.subr.bf16.mxu0 0
        %655 = vmatpush1.bf16.msra.mxu0 0
        %656 = vmatprep.subr.bf16.mxu0 0
        %657 = vmatpush1.bf16.msra.mxu0 0
        %658 = vmatprep.subr.bf16.mxu0 0
        %659 = vmatpush1.bf16.msra.mxu0 0
        %660 = vmatprep.subr.bf16.mxu0 0
        %661 = vmatpush1.bf16.msra.mxu0 0
        %662 = vmatprep.subr.bf16.mxu0 0
        %663 = vmatpush1.bf16.msra.mxu0 0
        %664 = vmatprep.subr.bf16.mxu0 0
        %665 = vmatpush1.bf16.msra.mxu0 0
        %666 = vmatprep.subr.bf16.mxu0 0
        %667 = vmatpush1.bf16.msra.mxu0 0
        %668 = vmatprep.subr.bf16.mxu0 0
        %669 = vmatpush1.bf16.msra.mxu0 0
        %670 = vmatprep.subr.bf16.mxu0 0
        %671 = vmatpush1.bf16.msra.mxu0 0
        %672 = vmatprep.subr.bf16.mxu0 0
        %673 = vmatpush1.bf16.msra.mxu0 0
        %674 = vmatprep.subr.bf16.mxu0 0
        %675 = vmatpush1.bf16.msra.mxu0 0
        %676 = vmatprep.subr.bf16.mxu0 0
        %677 = vmatpush1.bf16.msra.mxu0 0
        %678 = vmatprep.subr.bf16.mxu0 0
        %679 = vmatpush1.bf16.msra.mxu0 0
        %680 = vmatprep.subr.bf16.mxu0 0
        %681 = vmatpush1.bf16.msra.mxu0 0
        %682 = vmatprep.mubr.bf16.mxu0 0
        %683 = vmatmul.mubr.bf16.gmra.mrb[0].mxu0 %v645
        %v684 = vpop.f32.mrb[0].mxu0
        %v685 = vadd.f32 0.0, %v684
        %v686 = vpop.f32.mrb[0].mxu0
        %v687 = vpop.f32.mrb[0].mxu0
        %v688 = vpop.f32.mrb[0].mxu0
        %689 = vdwg.mxu0
        %691 = vrot.lane.b32.xlu0 %v685, 8
        %v692 = vpop.permute.xlu0 %691
        %vm694 = vcmask 130112
        %695 = vst.msk [vmem:[#allocation2] sm:$0xff] %vm694, %v692
        %696 = vrot.lane.b32.xlu0 %v465, 112
        %v697 = vpop.permute.xlu0 %696
        %698 = vrot.lane.b32.xlu0 %v465, 80
        %v699 = vpop.permute.xlu0 %698
        %v701 = vsel %vm469, %v697, 0
        %v704 = vsel %vm469, %v699, 0
        %706 = vmatprep.subr.bf16.mxu0 0
        %707 = vmatpush1.bf16.xpose.msra.mxu0 %v704
        %708 = vmatprep.subr.bf16.mxu0 0
        %709 = vmatpush1.bf16.xpose.msra.mxu0 0
        %710 = vmatprep.subr.bf16.mxu0 0
        %711 = vmatpush1.bf16.xpose.msra.mxu0 0
        %712 = vmatprep.subr.bf16.mxu0 0
        %713 = vmatpush1.bf16.xpose.msra.mxu0 0
        %714 = vmatprep.subr.bf16.mxu0 0
        %715 = vmatpush1.bf16.xpose.msra.mxu0 0
        %716 = vmatprep.subr.bf16.mxu0 0
        %717 = vmatpush1.bf16.xpose.msra.mxu0 0
        %718 = vmatprep.subr.bf16.mxu0 0
        %719 = vmatpush1.bf16.xpose.msra.mxu0 0
        %720 = vmatprep.subr.bf16.mxu0 0
        %721 = vmatpush1.bf16.xpose.msra.mxu0 0
        %722 = vmatprep.subr.bf16.mxu0 0
        %723 = vmatpush1.bf16.xpose.msra.mxu0 0
        %724 = vmatprep.subr.bf16.mxu0 0
        %725 = vmatpush1.bf16.xpose.msra.mxu0 0
        %726 = vmatprep.subr.bf16.mxu0 0
        %727 = vmatpush1.bf16.xpose.msra.mxu0 0
        %728 = vmatprep.subr.bf16.mxu0 0
        %729 = vmatpush1.bf16.xpose.msra.mxu0 0
        %730 = vmatprep.subr.bf16.mxu0 0
        %731 = vmatpush1.bf16.xpose.msra.mxu0 0
        %732 = vmatprep.subr.bf16.mxu0 0
        %733 = vmatpush1.bf16.xpose.msra.mxu0 0
        %734 = vmatprep.subr.bf16.mxu0 0
        %735 = vmatpush1.bf16.xpose.msra.mxu0 0
        %736 = vmatprep.subr.bf16.mxu0 0
        %737 = vmatpush1.bf16.xpose.msra.mxu0 0
        %738 = vmatprep.mubr.bf16.mxu0 0
        %739 = vmatmul.mubr.bf16.gmra.mrb[0].mxu0 %v701
        %v740 = vpop.f32.mrb[0].mxu0
        %v741 = vadd.f32 0.0, %v740
        %v742 = vpop.f32.mrb[0].mxu0
        %v743 = vpop.f32.mrb[0].mxu0
        %v744 = vpop.f32.mrb[0].mxu0
        %745 = vdwg.mxu0
        %v746 = vmul.f32 %v741, 0.35355338
        %v747 = vsel %vm469, %v746, -inf
        %748 = vmax.xlane.f32.xlu0 %v747
        %v749 = vpop.xlane.xlu0 %748
        %v750 = vsub.f32 %v746, %v749
        %v751 = vmul.f32 %v750, 1.442695
        %v752 = vpow.pop %v751
        %v753 = vsel %vm469, %v752, 0.0
        %754 = vadd.xlane.f32.xlu0 %v753
        %v755 = vpop.xlane.xlu0 %754
        %v756 = vrcp.pop %v755
        %v757 = vmul.f32 %v752, %v756
        %v758 = vpack.c.bf16 %v757, %v757
        %759 = vrot.lane.b32.xlu0 %v465, 48
        %v760 = vpop.permute.xlu0 %759
        %v762 = vsel %vm469, %v758, 0
        %v765 = vsel %vm534, %v760, 0
        %767 = vmatprep.subr.bf16.mxu0 0
        %768 = vmatpush1.bf16.msra.mxu0 %v765
        %769 = vmatprep.subr.bf16.mxu0 0
        %770 = vmatpush1.bf16.msra.mxu0 0
        %771 = vmatprep.subr.bf16.mxu0 0
        %772 = vmatpush1.bf16.msra.mxu0 0
        %773 = vmatprep.subr.bf16.mxu0 0
        %774 = vmatpush1.bf16.msra.mxu0 0
        %775 = vmatprep.subr.bf16.mxu0 0
        %776 = vmatpush1.bf16.msra.mxu0 0
        %777 = vmatprep.subr.bf16.mxu0 0
        %778 = vmatpush1.bf16.msra.mxu0 0
        %779 = vmatprep.subr.bf16.mxu0 0
        %780 = vmatpush1.bf16.msra.mxu0 0
        %781 = vmatprep.subr.bf16.mxu0 0
        %782 = vmatpush1.bf16.msra.mxu0 0
        %783 = vmatprep.subr.bf16.mxu0 0
        %784 = vmatpush1.bf16.msra.mxu0 0
        %785 = vmatprep.subr.bf16.mxu0 0
        %786 = vmatpush1.bf16.msra.mxu0 0
        %787 = vmatprep.subr.bf16.mxu0 0
        %788 = vmatpush1.bf16.msra.mxu0 0
        %789 = vmatprep.subr.bf16.mxu0 0
        %790 = vmatpush1.bf16.msra.mxu0 0
        %791 = vmatprep.subr.bf16.mxu0 0
        %792 = vmatpush1.bf16.msra.mxu0 0
        %793 = vmatprep.subr.bf16.mxu0 0
        %794 = vmatpush1.bf16.msra.mxu0 0
        %795 = vmatprep.subr.bf16.mxu0 0
        %796 = vmatpush1.bf16.msra.mxu0 0
        %797 = vmatprep.subr.bf16.mxu0 0
        %798 = vmatpush1.bf16.msra.mxu0 0
        %799 = vmatprep.mubr.bf16.mxu0 0
        %800 = vmatmul.mubr.bf16.gmra.mrb[0].mxu0 %v762
        %v801 = vpop.f32.mrb[0].mxu0
        %v802 = vadd.f32 0.0, %v801
        %v803 = vpop.f32.mrb[0].mxu0
        %v804 = vpop.f32.mrb[0].mxu0
        %v805 = vpop.f32.mrb[0].mxu0
        %806 = vdwg.mxu0
        %808 = vrot.lane.b32.xlu0 %v802, 16
        %v809 = vpop.permute.xlu0 %808
        %vm811 = vcmask 195712
        %812 = vst.msk [vmem:[#allocation2] sm:$0xff] %vm811, %v809
        %813 = vrot.lane.b32.xlu0 %v465, 104
        %v814 = vpop.permute.xlu0 %813
        %815 = vrot.lane.b32.xlu0 %v465, 72
        %v816 = vpop.permute.xlu0 %815
        %v818 = vsel %vm469, %v814, 0
        %v821 = vsel %vm469, %v816, 0
        %823 = vmatprep.subr.bf16.mxu0 0
        %824 = vmatpush1.bf16.xpose.msra.mxu0 %v821
        %825 = vmatprep.subr.bf16.mxu0 0
        %826 = vmatpush1.bf16.xpose.msra.mxu0 0
        %827 = vmatprep.subr.bf16.mxu0 0
        %828 = vmatpush1.bf16.xpose.msra.mxu0 0
        %829 = vmatprep.subr.bf16.mxu0 0
        %830 = vmatpush1.bf16.xpose.msra.mxu0 0
        %831 = vmatprep.subr.bf16.mxu0 0
        %832 = vmatpush1.bf16.xpose.msra.mxu0 0
        %833 = vmatprep.subr.bf16.mxu0 0
        %834 = vmatpush1.bf16.xpose.msra.mxu0 0
        %835 = vmatprep.subr.bf16.mxu0 0
        %836 = vmatpush1.bf16.xpose.msra.mxu0 0
        %837 = vmatprep.subr.bf16.mxu0 0
        %838 = vmatpush1.bf16.xpose.msra.mxu0 0
        %839 = vmatprep.subr.bf16.mxu0 0
        %840 = vmatpush1.bf16.xpose.msra.mxu0 0
        %841 = vmatprep.subr.bf16.mxu0 0
        %842 = vmatpush1.bf16.xpose.msra.mxu0 0
        %843 = vmatprep.subr.bf16.mxu0 0
        %844 = vmatpush1.bf16.xpose.msra.mxu0 0
        %845 = vmatprep.subr.bf16.mxu0 0
        %846 = vmatpush1.bf16.xpose.msra.mxu0 0
        %847 = vmatprep.subr.bf16.mxu0 0
        %848 = vmatpush1.bf16.xpose.msra.mxu0 0
        %849 = vmatprep.subr.bf16.mxu0 0
        %850 = vmatpush1.bf16.xpose.msra.mxu0 0
        %851 = vmatprep.subr.bf16.mxu0 0
        %852 = vmatpush1.bf16.xpose.msra.mxu0 0
        %853 = vmatprep.subr.bf16.mxu0 0
        %854 = vmatpush1.bf16.xpose.msra.mxu0 0
        %855 = vmatprep.mubr.bf16.mxu0 0
        %856 = vmatmul.mubr.bf16.gmra.mrb[0].mxu0 %v818
        %v857 = vpop.f32.mrb[0].mxu0
        %v858 = vadd.f32 0.0, %v857
        %v859 = vpop.f32.mrb[0].mxu0
        %v860 = vpop.f32.mrb[0].mxu0
        %v861 = vpop.f32.mrb[0].mxu0
        %862 = vdwg.mxu0
        %v863 = vmul.f32 %v858, 0.35355338
        %v864 = vsel %vm469, %v863, -inf
        %865 = vmax.xlane.f32.xlu0 %v864
        %v866 = vpop.xlane.xlu0 %865
        %v867 = vsub.f32 %v863, %v866
        %v868 = vmul.f32 %v867, 1.442695
        %v869 = vpow.pop %v868
        %v870 = vsel %vm469, %v869, 0.0
        %871 = vadd.xlane.f32.xlu0 %v870
        %v872 = vpop.xlane.xlu0 %871
        %v873 = vrcp.pop %v872
        %v874 = vmul.f32 %v869, %v873
        %v875 = vpack.c.bf16 %v874, %v874
        %876 = vrot.lane.b32.xlu0 %v465, 40
        %v877 = vpop.permute.xlu0 %876
        %v879 = vsel %vm469, %v875, 0
        %v882 = vsel %vm534, %v877, 0
        %884 = vmatprep.subr.bf16.mxu0 0
        %885 = vmatpush1.bf16.msra.mxu0 %v882
        %886 = vmatprep.subr.bf16.mxu0 0
        %887 = vmatpush1.bf16.msra.mxu0 0
        %888 = vmatprep.subr.bf16.mxu0 0
        %889 = vmatpush1.bf16.msra.mxu0 0
        %890 = vmatprep.subr.bf16.mxu0 0
        %891 = vmatpush1.bf16.msra.mxu0 0
        %892 = vmatprep.subr.bf16.mxu0 0
        %893 = vmatpush1.bf16.msra.mxu0 0
        %894 = vmatprep.subr.bf16.mxu0 0
        %895 = vmatpush1.bf16.msra.mxu0 0
        %896 = vmatprep.subr.bf16.mxu0 0
        %897 = vmatpush1.bf16.msra.mxu0 0
        %898 = vmatprep.subr.bf16.mxu0 0
        %899 = vmatpush1.bf16.msra.mxu0 0
        %900 = vmatprep.subr.bf16.mxu0 0
        %901 = vmatpush1.bf16.msra.mxu0 0
        %902 = vmatprep.subr.bf16.mxu0 0
        %903 = vmatpush1.bf16.msra.mxu0 0
        %904 = vmatprep.subr.bf16.mxu0 0
        %905 = vmatpush1.bf16.msra.mxu0 0
        %906 = vmatprep.subr.bf16.mxu0 0
        %907 = vmatpush1.bf16.msra.mxu0 0
        %908 = vmatprep.subr.bf16.mxu0 0
        %909 = vmatpush1.bf16.msra.mxu0 0
        %910 = vmatprep.subr.bf16.mxu0 0
        %911 = vmatpush1.bf16.msra.mxu0 0
        %912 = vmatprep.subr.bf16.mxu0 0
        %913 = vmatpush1.bf16.msra.mxu0 0
        %914 = vmatprep.subr.bf16.mxu0 0
        %915 = vmatpush1.bf16.msra.mxu0 0
        %916 = vmatprep.mubr.bf16.mxu0 0
        %917 = vmatmul.mubr.bf16.gmra.mrb[0].mxu0 %v879
        %v918 = vpop.f32.mrb[0].mxu0
        %v919 = vadd.f32 0.0, %v918
        %v920 = vpop.f32.mrb[0].mxu0
        %v921 = vpop.f32.mrb[0].mxu0
        %v922 = vpop.f32.mrb[0].mxu0
        %923 = vdwg.mxu0
        %925 = vrot.lane.b32.xlu0 %v919, 24
        %v926 = vpop.permute.xlu0 %925
        %vm928 = vcmask 261312
        %929 = vst.msk [vmem:[#allocation2] sm:$0xff] %vm928, %v926
        %v930 = vld [vmem:[#allocation2] sm:$0xff]
        %v931 = vld [vmem:[%s5] sm:$0xf]
        %v932 = vld [vmem:[%s5 + $0x4] sm:$0xf]
        %v933 = vld [vmem:[%s5 + $0x8] sm:$0xf]
        %v934 = vld [vmem:[%s5 + $0xc] sm:$0xf]
        %v935 = vpack.c.bf16 %v930, %v930
        %v940 = vunpack.c.l.b16 %v931
        %v941 = vunpack.c.l.b16 %v932
        %v942 = vunpack.c.l.b16 %v933
        %v943 = vunpack.c.l.b16 %v934
        %v944 = vpack.c.b16 %v941, %v940
        %v945 = vpack.c.b16 %v943, %v942
        %v949 = vsel %vm337, %v935, 0
        %951 = vmatprep.subr.bf16.mxu0 0
        %952 = vmatpush1.bf16.msra.mxu0 %v944
        %953 = vmatprep.subr.bf16.mxu0 0
        %954 = vmatpush1.bf16.msra.mxu0 %v945
        %955 = vmatprep.subr.bf16.mxu0 0
        %956 = vmatpush1.bf16.msra.mxu0 0
        %957 = vmatprep.subr.bf16.mxu0 0
        %958 = vmatpush1.bf16.msra.mxu0 0
        %959 = vmatprep.subr.bf16.mxu0 0
        %960 = vmatpush1.bf16.msra.mxu0 0
        %961 = vmatprep.subr.bf16.mxu0 0
        %962 = vmatpush1.bf16.msra.mxu0 0
        %963 = vmatprep.subr.bf16.mxu0 0
        %964 = vmatpush1.bf16.msra.mxu0 0
        %965 = vmatprep.subr.bf16.mxu0 0
        %966 = vmatpush1.bf16.msra.mxu0 0
        %967 = vmatprep.subr.bf16.mxu0 0
        %968 = vmatpush1.bf16.msra.mxu0 0
        %969 = vmatprep.subr.bf16.mxu0 0
        %970 = vmatpush1.bf16.msra.mxu0 0
        %971 = vmatprep.subr.bf16.mxu0 0
        %972 = vmatpush1.bf16.msra.mxu0 0
        %973 = vmatprep.subr.bf16.mxu0 0
        %974 = vmatpush1.bf16.msra.mxu0 0
        %975 = vmatprep.subr.bf16.mxu0 0
        %976 = vmatpush1.bf16.msra.mxu0 0
        %977 = vmatprep.subr.bf16.mxu0 0
        %978 = vmatpush1.bf16.msra.mxu0 0
        %979 = vmatprep.subr.bf16.mxu0 0
        %980 = vmatpush1.bf16.msra.mxu0 0
        %981 = vmatprep.subr.bf16.mxu0 0
        %982 = vmatpush1.bf16.msra.mxu0 0
        %983 = vmatprep.mubr.bf16.mxu0 0
        %984 = vmatmul.mubr.bf16.gmra.mrb[0].mxu0 %v949
        %v985 = vpop.f32.mrb[0].mxu0
        %v986 = vadd.f32 %v376, %v985
        %v987 = vpop.f32.mrb[0].mxu0
        %v988 = vpop.f32.mrb[0].mxu0
        %v989 = vpop.f32.mrb[0].mxu0
        %990 = vdwg.mxu0
        %v991 = vsel %vm337, %v986, 0.0
        %992 = vadd.xlane.f32.xlu0 %v991
        %v993 = vpop.xlane.xlu0 %992
        %v994 = vmul.f32 %v993, %v384
        %v995 = vsub.f32 %v986, %v994
        %v996 = vmul.f32 %v995, %v995
        %v997 = vsel %vm337, %v996, 0.0
        %998 = vadd.xlane.f32.xlu0 %v997
        %v999 = vpop.xlane.xlu0 %998
        %v1000 = vmul.f32 %v999, %v384
        %v1001 = vadd.f32 %v1000, 1e-05
        %v1002 = vrsqrt.pop %v1001
        %v1003 = vmul.f32 %v995, %v1002
        %v1004 = vlaneseq
        %v1005 = vshrl.u32 %v1004, 7
        %v1006 = vsub.s32 3, %v1005
        %v1007 = vrot.slane %v314, %v1006
        %v1008 = vmul.f32 %v1003, %v1007
        %v1009 = vlaneseq
        %v1010 = vshrl.u32 %v1009, 7
        %v1011 = vsub.s32 4, %v1010
        %v1012 = vrot.slane %v314, %v1011
        %v1013 = vadd.f32 %v1008, %v1012
        %v1014 = vld [vmem:[%s6] sm:$0xf]
        %v1015 = vld [vmem:[%s6 + $0x4] sm:$0xf]
        %v1016 = vld [vmem:[%s6 + $0x8] sm:$0xf]
        %v1017 = vld [vmem:[%s6 + $0xc] sm:$0xf]
        %v1018 = vpack.c.bf16 %v1013, %v1013
        %v1019 = vld [vmem:[%s2] sm:$0x1]
        %v1021 = vlaneseq
        %v1022 = vshrl.u32 %v1021, 7
        %v1023 = vsub.s32 0, %v1022
        %v1024 = vrot.slane %v1019, %v1023
        %v1030 = vunpack.c.l.b16 %v1014
        %v1031 = vunpack.c.l.b16 %v1015
        %v1032 = vunpack.c.l.b16 %v1016
        %v1033 = vunpack.c.l.b16 %v1017
        %v1034 = vpack.c.b16 %v1031, %v1030
        %v1035 = vpack.c.b16 %v1033, %v1032
        %v1039 = vsel %vm337, %v1018, 0
        %1041 = vmatprep.subr.bf16.mxu0 0
        %1042 = vmatpush1.bf16.msra.mxu0 %v1034
        %1043 = vmatprep.subr.bf16.mxu0 0
        %1044 = vmatpush1.bf16.msra.mxu0 %v1035
        %1045 = vmatprep.subr.bf16.mxu0 0
        %1046 = vmatpush1.bf16.msra.mxu0 0
        %1047 = vmatprep.subr.bf16.mxu0 0
        %1048 = vmatpush1.bf16.msra.mxu0 0
        %1049 = vmatprep.subr.bf16.mxu0 0
        %1050 = vmatpush1.bf16.msra.mxu0 0
        %1051 = vmatprep.subr.bf16.mxu0 0
        %1052 = vmatpush1.bf16.msra.mxu0 0
        %1053 = vmatprep.subr.bf16.mxu0 0
        %1054 = vmatpush1.bf16.msra.mxu0 0
        %1055 = vmatprep.subr.bf16.mxu0 0
        %1056 = vmatpush1.bf16.msra.mxu0 0
        %1057 = vmatprep.subr.bf16.mxu0 0
        %1058 = vmatpush1.bf16.msra.mxu0 0
        %1059 = vmatprep.subr.bf16.mxu0 0
        %1060 = vmatpush1.bf16.msra.mxu0 0
        %1061 = vmatprep.subr.bf16.mxu0 0
        %1062 = vmatpush1.bf16.msra.mxu0 0
        %1063 = vmatprep.subr.bf16.mxu0 0
        %1064 = vmatpush1.bf16.msra.mxu0 0
        %1065 = vmatprep.subr.bf16.mxu0 0
        %1066 = vmatpush1.bf16.msra.mxu0 0
        %1067 = vmatprep.subr.bf16.mxu0 0
        %1068 = vmatpush1.bf16.msra.mxu0 0
        %1069 = vmatprep.subr.bf16.mxu0 0
        %1070 = vmatpush1.bf16.msra.mxu0 0
        %1071 = vmatprep.subr.bf16.mxu0 0
        %1072 = vmatpush1.bf16.msra.mxu0 0
        %1073 = vmatprep.mubr.bf16.mxu0 0
        %1074 = vmatmul.mubr.bf16.gmra.mrb[0].mxu0 %v1039
        %v1075 = vpop.f32.mrb[0].mxu0
        %v1076 = vadd.f32 %v1024, %v1075
        %v1077 = vpop.f32.mrb[0].mxu0
        %v1078 = vpop.f32.mrb[0].mxu0
        %v1079 = vpop.f32.mrb[0].mxu0
        %1080 = vdwg.mxu0
        %v1081 = vmul.f32 %v1076, 0.5
        %v1082 = vmul.f32 %v1076, 0.044715
        %v1083 = vmul.f32 %v1082, %v1076
        %v1084 = vmul.f32 %v1083, %v1076
        %v1085 = vadd.f32 %v1076, %v1084
        %v1086 = vmul.f32 %v1085, 0.7978846
        %v1087 = vtanh.pop %v1086
        %v1088 = vadd.f32 %v1087, 1.0
        %v1089 = vmul.f32 %v1081, %v1088
        %v1090 = vld [vmem:[%s7] sm:$0xf]
        %v1091 = vld [vmem:[%s7 + $0x4] sm:$0xf]
        %v1092 = vld [vmem:[%s7 + $0x8] sm:$0xf]
        %v1093 = vld [vmem:[%s7 + $0xc] sm:$0xf]
        %v1094 = vld [vmem:[%s7 + $0x10] sm:$0xf]
        %v1095 = vld [vmem:[%s7 + $0x14] sm:$0xf]
        %v1096 = vld [vmem:[%s7 + $0x18] sm:$0xf]
        %v1097 = vld [vmem:[%s7 + $0x1c] sm:$0xf]
        %v1098 = vld [vmem:[%s7 + $0x20] sm:$0xf]
        %v1099 = vld [vmem:[%s7 + $0x24] sm:$0xf]
        %v1100 = vld [vmem:[%s7 + $0x28] sm:$0xf]
        %v1101 = vld [vmem:[%s7 + $0x2c] sm:$0xf]
        %v1102 = vld [vmem:[%s7 + $0x30] sm:$0xf]
        %v1103 = vld [vmem:[%s7 + $0x34] sm:$0xf]
        %v1104 = vld [vmem:[%s7 + $0x38] sm:$0xf]
        %v1105 = vld [vmem:[%s7 + $0x3c] sm:$0xf]
        %v1106 = vpack.c.bf16 %v1089, %v1089
        %v1107 = vlaneseq
        %v1108 = vshrl.u32 %v1107, 7
        %v1109 = vsub.s32 5, %v1108
        %v1110 = vrot.slane %v314, %v1109
        %v1127 = vunpack.c.l.b16 %v1090
        %v1128 = vunpack.c.l.b16 %v1091
        %v1129 = vunpack.c.l.b16 %v1092
        %v1130 = vunpack.c.l.b16 %v1093
        %v1131 = vunpack.c.l.b16 %v1094
        %v1132 = vunpack.c.l.b16 %v1095
        %v1133 = vunpack.c.l.b16 %v1096
        %v1134 = vunpack.c.l.b16 %v1097
        %v1135 = vunpack.c.l.b16 %v1098
        %v1136 = vunpack.c.l.b16 %v1099
        %v1137 = vunpack.c.l.b16 %v1100
        %v1138 = vunpack.c.l.b16 %v1101
        %v1139 = vunpack.c.l.b16 %v1102
        %v1140 = vunpack.c.l.b16 %v1103
        %v1141 = vunpack.c.l.b16 %v1104
        %v1142 = vunpack.c.l.b16 %v1105
        %v1143 = vpack.c.b16 %v1128, %v1127
        %v1144 = vpack.c.b16 %v1130, %v1129
        %v1145 = vpack.c.b16 %v1132, %v1131
        %v1146 = vpack.c.b16 %v1134, %v1133
        %v1147 = vpack.c.b16 %v1136, %v1135
        %v1148 = vpack.c.b16 %v1138, %v1137
        %v1149 = vpack.c.b16 %v1140, %v1139
        %v1150 = vpack.c.b16 %v1142, %v1141
        %1159 = vmatprep.subr.bf16.mxu0 0
        %1160 = vmatpush1.bf16.msra.mxu0 %v1143
        %1161 = vmatprep.subr.bf16.mxu0 0
        %1162 = vmatpush1.bf16.msra.mxu0 %v1144
        %1163 = vmatprep.subr.bf16.mxu0 0
        %1164 = vmatpush1.bf16.msra.mxu0 %v1145
        %1165 = vmatprep.subr.bf16.mxu0 0
        %1166 = vmatpush1.bf16.msra.mxu0 %v1146
        %1167 = vmatprep.subr.bf16.mxu0 0
        %1168 = vmatpush1.bf16.msra.mxu0 %v1147
        %1169 = vmatprep.subr.bf16.mxu0 0
        %1170 = vmatpush1.bf16.msra.mxu0 %v1148
        %1171 = vmatprep.subr.bf16.mxu0 0
        %1172 = vmatpush1.bf16.msra.mxu0 %v1149
        %1173 = vmatprep.subr.bf16.mxu0 0
        %1174 = vmatpush1.bf16.msra.mxu0 %v1150
        %1175 = vmatprep.subr.bf16.mxu0 0
        %1176 = vmatpush1.bf16.msra.mxu0 0
        %1177 = vmatprep.subr.bf16.mxu0 0
        %1178 = vmatpush1.bf16.msra.mxu0 0
        %1179 = vmatprep.subr.bf16.mxu0 0
        %1180 = vmatpush1.bf16.msra.mxu0 0
        %1181 = vmatprep.subr.bf16.mxu0 0
        %1182 = vmatpush1.bf16.msra.mxu0 0
        %1183 = vmatprep.subr.bf16.mxu0 0
        %1184 = vmatpush1.bf16.msra.mxu0 0
        %1185 = vmatprep.subr.bf16.mxu0 0
        %1186 = vmatpush1.bf16.msra.mxu0 0
        %1187 = vmatprep.subr.bf16.mxu0 0
        %1188 = vmatpush1.bf16.msra.mxu0 0
        %1189 = vmatprep.subr.bf16.mxu0 0
        %1190 = vmatpush1.bf16.msra.mxu0 0
        %1191 = vmatprep.mubr.bf16.mxu0 0
        %1192 = vmatmul.mubr.bf16.gmra.mrb[0].mxu0 %v1106
        %v1193 = vpop.f32.mrb[0].mxu0
        %v1194 = vadd.f32 %v1110, %v1193
        %v1195 = vpop.f32.mrb[0].mxu0
        %v1196 = vpop.f32.mrb[0].mxu0
        %v1197 = vpop.f32.mrb[0].mxu0
        %1198 = vdwg.mxu0
        %v1199 = vadd.f32 %v376, %v1194
        %v1200 = vsel %vm337, %v1199, 0.0
        %v1201 = vrot.slane %v1200, 4
        %v1202 = vadd.f32 %v1200, %v1201
        %v1203 = vrot.slane %v1202, 2
        %v1204 = vadd.f32 %v1202, %v1203
        %v1205 = vrot.slane %v1204, 1
        %v1206 = vadd.f32 %v1204, %v1205
        %v1207 = vrcp.pop 8.0
        %v1208 = vmul.f32 %v1206, %v1207
        %vm1209 = vcmask 253952
        %1210 = vst.msk [vmem:[%s308] sm:$0x1] %vm1209, %v1208
        %s1211 = sand.u32 %s204, 1
        %s1212 = scalar_lea.sflag [#allocation5], %s1211
        %s1213 = sand.u32 %s204, 1
        %s1214 = scalar_lea.vmem [#allocation6], %s1213
        // Predicated region
        $region57: #{tpu_custom_call.1} parent=51 // pred_check
          %p1215 = pneg %p214
        $region58: #{tpu_custom_call.1} parent=51 // pred_check_branch
          %1217 = sbr.rel (%p1215) target = $region60
        $region59: #{tpu_custom_call.1} parent=51 // pred_region
          %s1219 = ssub.s32 16, 16
          %1220 = vsyncadd %s1212, %s1219
          %s1221 = smul.addr %s23, 16
          %s1222 = scalar_lea.hbm %s8, %s1221
          %s1224 = sshll.u32 %s1214, 4
          %s1225 = int_to_ptr.vmem [resolvable:$true] %s1224
          %1227 = dma.vmem_to_hbm [thread:$0]  %s1225, 16, %s1222, %s1212
        $region60: #{tpu_custom_call.1} parent=51 // pred_fallthru
          _
      $region52: #{tpu_custom_call.1} parent=5 // pred_fallthru
        _
      %p1228 = scmp.le.s32.totalorder 2, %s18
      // Predicated region
      $region61: #{tpu_custom_call.1} parent=5 // pred_check
        %p1229 = pneg %p1228
      $region62: #{tpu_custom_call.1} parent=5 // pred_check_branch
        %1231 = sbr.rel (%p1229) target = $region64
      $region63: #{tpu_custom_call.1} parent=5 // pred_region
        %s1232 = ssub.s32 %s18, 2
        // Predicated region
        $region65: #{tpu_custom_call.1} parent=63 // pred_check
          %p1233 = pneg %p220
        $region66: #{tpu_custom_call.1} parent=63 // pred_check_branch
          %1235 = sbr.rel (%p1233) target = $region68
        $region67: #{tpu_custom_call.1} parent=63 // pred_region
          %s1236 = sand.u32 %s205, 1
          %s1237 = scalar_lea.sflag [#allocation5], %s1236
          %s1238 = sand.u32 %s205, 1
          %s1239 = scalar_lea.vmem [#allocation6], %s1238
          %1240 = dma.done %s1237, 16
        $region68: #{tpu_custom_call.1} parent=63 // pred_fallthru
          _
      $region64: #{tpu_custom_call.1} parent=5 // pred_fallthru
        _
    $region6: #{tpu_custom_call.1} parent=1 // loop_footer
      %s22 = sadd.s32 1, %s18
    $region7: #{tpu_custom_call.1} parent=1 // loop_footer_branch
      %17 = sbr.rel target = $region3
    $region8: #{tpu_custom_call.1} parent=1 // loop_exit
      _
    %1241 = vsyncpa [#allocation4], 1
    %s1242 = scalar_lea.sflag [#allocation4], 1
    %1243 = vsyncpa %s1242, 1
    %1244 = vsyncpa [#allocation5], 1
    %s1245 = scalar_lea.sflag [#allocation5], 1
    %1246 = vsyncpa %s1245, 1

</llo_original>
